<compile_context>
chip_gen: v7x
topology: tpu7x:2x2x1
jax: 0.10.0
libtpu: 0.0.40
codegen_flags: <defaults>
</compile_context>

<pallas_src>
import numpy as np
import jax
import jax.numpy as jnp
from jax import lax
from jax.experimental import pallas as pl
from jax.experimental.pallas import tpu as pltpu

EPS = 1e-5


# ---------------------------------------------------------------------------
# Kernel 1: fc + BatchNorm2d(1) + ReLU
# ---------------------------------------------------------------------------
def fc_bn_relu_kernel(x_ref, w_ref, b_ref, g_ref, beta_ref, o_ref):
    # x: (B, In) f32, w: (In, F) bf16, b: (1, F) f32, g/beta: (1, 1) f32
    y = jnp.dot(x_ref[...].astype(jnp.bfloat16), w_ref[...],
                preferred_element_type=jnp.float32)
    y = y + b_ref[...]
    n = float(y.shape[0] * y.shape[1])
    s1 = jnp.sum(y)
    s2 = jnp.sum(y * y)
    mean = s1 / n
    var = s2 / n - mean * mean               # one-pass batch stats
    y = (y - mean) * lax.rsqrt(var + EPS)
    y = y * g_ref[...] + beta_ref[...]
    o_ref[...] = jnp.maximum(y, 0.0)


# ---------------------------------------------------------------------------
# Kernel 2: conv1+BN+ReLU -> conv2+BN+ReLU -> conv3(stride2)+tanh (fused)
# ---------------------------------------------------------------------------
def make_gen_conv_kernel(B, H, W, C1, C2):
    HP = H + 2              # padded rows (1 zero row each side)
    L = 8                   # sublane-aligned left pad (cols [0,8) are zero)
    WP = 72                 # L + W + 1 right-pad zero col, rounded up
    N = B * H * W
    Ho, Wo = H // 2, W // 2

    def kernel(p1_ref, w1_ref, b1_ref, g1_ref, be1_ref,
               w2_ref, b2_ref, g2_ref, be2_ref,
               w3_ref, b3_ref, sel_ref,
               o_ref, h1p_ref, h2p_ref, im2_ref):
        inv_n = 1.0 / N

        # ---- Conv1 (1 -> C1): one bf16 im2col matmul + BN(batch) + ReLU --
        a1 = jnp.dot(p1_ref[...], w1_ref[...],
                     preferred_element_type=jnp.float32)          # (N, C1)
        a1 = a1 + b1_ref[...]
        m1 = jnp.sum(a1, axis=0, keepdims=True) * inv_n
        v1 = jnp.sum(a1 * a1, axis=0, keepdims=True) * inv_n - m1 * m1
        h1 = (a1 - m1) * lax.rsqrt(v1 + EPS) * g1_ref[...] + be1_ref[...]
        h1 = jnp.maximum(h1, 0.0)

        # stage into zero-padded NHWC VMEM scratch (aligned interior)
        h1p_ref[...] = jnp.zeros((B, HP, WP, C1), jnp.float32)
        h1p_ref[:, 1:1 + H, L:L + W, :] = h1.reshape(B, H, W, C1)

        # ---- Conv2 (C1 -> C2): build (N, 9*C1) im2col in bf16 VMEM scratch,
        #      then a single MXU dot + BN(batch) + ReLU ---------------------
        for kh in range(3):
            for kw in range(3):
                t = kh * 3 + kw
                patch = h1p_ref[:, kh:kh + H, L - 1 + kw:L - 1 + kw + W, :]
                im2_ref[:, t * C1:(t + 1) * C1] = (
                    patch.reshape(N, C1).astype(jnp.bfloat16))
        a2 = jnp.dot(im2_ref[...], w2_ref[...],
                     preferred_element_type=jnp.float32)          # (N, C2)
        a2 = a2 + b2_ref[...]
        m2 = jnp.sum(a2, axis=0, keepdims=True) * inv_n
        v2 = jnp.sum(a2 * a2, axis=0, keepdims=True) * inv_n - m2 * m2
        h2 = (a2 - m2) * lax.rsqrt(v2 + EPS) * g2_ref[...] + be2_ref[...]
        h2 = jnp.maximum(h2, 0.0)

        h2p_ref[...] = jnp.zeros((B, HP, WP, C2), jnp.float32)
        h2p_ref[:, 1:1 + H, L:L + W, :] = h2.reshape(B, H, W, C2)

        # ---- Conv3 (C2 -> 1, stride 2, pad 1) + Tanh ----------------------
        # Row (H) parity via a free leading-dim reshape; channel contraction
        # on the VPU (multiply + lane reduce); stride-2 column pick as a
        # precomputed 0/1 selection matmul so the result stays lane-dense.
        w3 = w3_ref[...]                                          # (9, C2)
        h2r = h2p_ref[...].reshape(B, HP // 2, 2, WP, C2)
        g_kw = [jnp.zeros((B, Ho, WP), jnp.float32) for _ in range(3)]
        for kh in range(3):
            p0, par = ((0, 0), (0, 1), (1, 0))[kh]                # m = 2i'+kh
            rows = h2r[:, p0:p0 + Ho, par, :, :]                  # (B,Ho,WP,C2)
            for kw in range(3):
                t = kh * 3 + kw
                g_kw[kw] = g_kw[kw] + jnp.sum(rows * w3[t], axis=-1)

        acc = jnp.zeros((B * Ho, Wo), jnp.float32)
        for kw in range(3):
            acc = acc + jnp.dot(g_kw[kw].reshape(B * Ho, WP), sel_ref[kw],
                                preferred_element_type=jnp.float32)
        acc = acc.reshape(B, Ho, Wo)
        o_ref[...] = jnp.tanh(acc + b3_ref[...])

    return kernel


# ---------------------------------------------------------------------------
# Forward wrapper
# ---------------------------------------------------------------------------
def generator_forward(x, p):
    B = x.shape[0]
    H = W = 56
    C1, C2 = 64, 32
    N = B * H * W
    Ho, Wo = H // 2, W // 2
    f32, bf16 = jnp.float32, jnp.bfloat16
    vmem = pl.BlockSpec(memory_space=pltpu.MemorySpace.VMEM)

    # Stage 1: fc + BN(1) + ReLU  -> (B, 3136), lane-dense
    fc = pl.pallas_call(
        fc_bn_relu_kernel,
        out_shape=jax.ShapeDtypeStruct((B, H * W), f32),
        in_specs=[vmem] * 5,
        out_specs=vmem,
    )(x, p["fc_w"].astype(bf16), p["fc_b"], p["bn0_g"], p["bn0_b"])

    # Tiny XLA glue (25 KB): image re-layout + 3x3 patches for the 1-ch conv.
    img = fc.reshape(B, H, W)
    imgp = jnp.pad(img, ((0, 0), (1, 1), (1, 1)))
    patches = jnp.stack(
        [imgp[:, kh:kh + H, kw:kw + W] for kh in range(3) for kw in range(3)],
        axis=-1)                                    # (B, H, W, 9)
    p1 = patches.reshape(N, 9).astype(bf16)

    # Stride-2 column-selection constants (host-side, 24 KB):
    # sel[kw, w, j] = 1  iff  w == 2*j + kw + (L-1), with L = 8.
    HP, WP, L = H + 2, 72, 8
    sel_np = np.zeros((3, WP, Wo), np.float32)
    for kw in range(3):
        for j in range(Wo):
            sel_np[kw, 2 * j + kw + L - 1, j] = 1.0
    sel = jnp.asarray(sel_np)

    # Stage 2: fully fused conv pipeline (one Pallas call, VMEM-resident).
    kernel = make_gen_conv_kernel(B, H, W, C1, C2)
    out = pl.pallas_call(
        kernel,
        out_shape=jax.ShapeDtypeStruct((B, Ho, Wo), f32),
        in_specs=[vmem] * 12,
        out_specs=vmem,
        scratch_shapes=[
            pltpu.VMEM((B, HP, WP, C1), f32),       # padded conv1 output
            pltpu.VMEM((B, HP, WP, C2), f32),       # padded conv2 output
            pltpu.VMEM((N, 9 * C1), bf16),          # conv2 im2col
        ],
        compiler_params=pltpu.CompilerParams(
            vmem_limit_bytes=40 * 1024 * 1024),
    )(p1,
      p["c1_w"].reshape(9, C1).astype(bf16), p["c1_b"], p["bn1_g"], p["bn1_b"],
      p["c2_w"].reshape(9 * C1, C2).astype(bf16), p["c2_b"], p["bn2_g"],
      p["bn2_b"],
      p["c3_w"].reshape(9, C2), p["c3_b"], sel)

    return out[:, None, :, :]                       # (B, 1, 28, 28) NCHW


# ---------------------------------------------------------------------------
# Deterministic parameter init (shapes from the module __init__)
# ---------------------------------------------------------------------------
def init_params(key, input_size, num_feature):
    ks = jax.random.split(key, 8)

    def w(k, shape, scale=0.05):
        return (scale * jax.random.normal(k, shape)).astype(jnp.float32)

    p = {}
    p["fc_w"] = w(ks[0], (input_size, num_feature))   # == torch fc.weight.T
    p["fc_b"] = w(ks[1], (1, num_feature))
    p["bn0_g"] = jnp.ones((1, 1), jnp.float32)
    p["bn0_b"] = jnp.zeros((1, 1), jnp.float32)
    # Conv weights in HWIO (== torch (O,I,3,3).transpose(2,3,1,0))
    p["c1_w"] = w(ks[2], (3, 3, 1, 64))
    p["c1_b"] = w(ks[3], (1, 64))
    p["bn1_g"] = jnp.ones((1, 64), jnp.float32)
    p["bn1_b"] = jnp.zeros((1, 64), jnp.float32)
    p["c2_w"] = w(ks[4], (3, 3, 64, 32))
    p["c2_b"] = w(ks[5], (1, 32))
    p["bn2_g"] = jnp.ones((1, 32), jnp.float32)
    p["bn2_b"] = jnp.zeros((1, 32), jnp.float32)
    p["c3_w"] = w(ks[6], (3, 3, 32, 1))
    p["c3_b"] = w(ks[7], (1, 1))
    return p


# ---------------------------------------------------------------------------
# Pure-JAX reference for validation
# ---------------------------------------------------------------------------
def reference_forward(x, p):
    y = x @ p["fc_w"] + p["fc_b"]
    mean = jnp.mean(y)
    var = jnp.mean((y - mean) ** 2)
    y = (y - mean) * lax.rsqrt(var + EPS) * p["bn0_g"][0, 0] + p["bn0_b"][0, 0]
    y = jnp.maximum(y, 0.0)
    h = y.reshape(x.shape[0], 56, 56, 1)

    def conv(h, wgt, b, stride):
        return lax.conv_general_dilated(
            h, wgt, (stride, stride), ((1, 1), (1, 1)),
            dimension_numbers=("NHWC", "HWIO", "NHWC"),
            precision=lax.Precision.HIGHEST) + b

    def bn_relu(h, g, bt):
        m = jnp.mean(h, axis=(0, 1, 2), keepdims=True)
        v = jnp.mean((h - m) ** 2, axis=(0, 1, 2), keepdims=True)
        return jnp.maximum((h - m) * lax.rsqrt(v + EPS) * g + bt, 0.0)

    h = bn_relu(conv(h, p["c1_w"], p["c1_b"], 1), p["bn1_g"], p["bn1_b"])
    h = bn_relu(conv(h, p["c2_w"], p["c2_b"], 1), p["bn2_g"], p["bn2_b"])
    h = jnp.tanh(conv(h, p["c3_w"], p["c3_b"], 2))
    return h.transpose(0, 3, 1, 2)


if __name__ == "__main__":
    key = jax.random.PRNGKey(0)
    kx, kp = jax.random.split(key)

    B, input_size = 2, 100
    num_feature = 56 * 56   # required by view(B, 1, 56, 56)

    x = jax.random.normal(kx, (B, input_size), dtype=jnp.float32)
    params = init_params(kp, input_size, num_feature)

    out = jax.block_until_ready(generator_forward(x, params))
    assert out.shape == (B, 1, 28, 28), out.shape

    ref = jax.block_until_ready(reference_forward(x, params))
    err = float(jnp.max(jnp.abs(out - ref)))
    assert err < 5e-2, f"max abs err {err}"

    print("KERNEL_OK")
</pallas_src>

<mosaic_0001>
module attributes {stable_mosaic.version = 11 : i64} {
  func.func @fc_bn_relu_kernel(%arg0: memref<2x100xf32, #tpu.memory_space<vmem>>, %arg1: memref<100x3136xbf16, #tpu.memory_space<vmem>>, %arg2: memref<1x3136xf32, #tpu.memory_space<vmem>>, %arg3: memref<1x1xf32, #tpu.memory_space<vmem>>, %arg4: memref<1x1xf32, #tpu.memory_space<vmem>>, %arg5: memref<2x3136xf32, #tpu.memory_space<vmem>>) attributes {dimension_semantics = [], scalar_prefetch = 0 : i64, scratch_operands = 0 : i64, tpu.core_type = #tpu.core_type<tc>} {
    %c0 = arith.constant 0 : index
    %c0_0 = arith.constant 0 : index
    %0 = vector.load %arg0[%c0, %c0_0] : memref<2x100xf32, #tpu.memory_space<vmem>>, vector<2x100xf32>
    %1 = arith.truncf %0 : vector<2x100xf32> to vector<2x100xbf16>
    %c0_1 = arith.constant 0 : index
    %c0_2 = arith.constant 0 : index
    %2 = vector.load %arg1[%c0_1, %c0_2] : memref<100x3136xbf16, #tpu.memory_space<vmem>>, vector<100x3136xbf16>
    %cst = arith.constant dense<0.000000e+00> : vector<2x3136xf32>
    %3 = tpu.matmul %1, %2, %cst {dimension_numbers = #tpu.dot_dimension_numbers<[1], [0], [0], [1], [0, 0, 1, 1], [], []>} : vector<2x100xbf16>, vector<100x3136xbf16>, vector<2x3136xf32> -> vector<2x3136xf32>
    %c0_3 = arith.constant 0 : index
    %c0_4 = arith.constant 0 : index
    %4 = vector.load %arg2[%c0_3, %c0_4] : memref<1x3136xf32, #tpu.memory_space<vmem>>, vector<1x3136xf32>
    %5 = vector.broadcast %4 : vector<1x3136xf32> to vector<2x3136xf32>
    %6 = arith.addf %3, %5 : vector<2x3136xf32>
    %7 = vector.shape_cast %6 : vector<2x3136xf32> to vector<1x2x3136xf32>
    %cst_5 = arith.constant dense<0.000000e+00> : vector<1xf32>
    %8 = vector.multi_reduction <add>, %7, %cst_5 [1, 2] : vector<1x2x3136xf32> to vector<1xf32>
    %9 = vector.shape_cast %8 : vector<1xf32> to vector<1x1x1xf32>
    %10 = vector.extract %9[0, 0, 0] : f32 from vector<1x1x1xf32>
    %11 = arith.mulf %6, %6 : vector<2x3136xf32>
    %12 = vector.shape_cast %11 : vector<2x3136xf32> to vector<1x2x3136xf32>
    %cst_6 = arith.constant dense<0.000000e+00> : vector<1xf32>
    %13 = vector.multi_reduction <add>, %12, %cst_6 [1, 2] : vector<1x2x3136xf32> to vector<1xf32>
    %14 = vector.shape_cast %13 : vector<1xf32> to vector<1x1x1xf32>
    %15 = vector.extract %14[0, 0, 0] : f32 from vector<1x1x1xf32>
    %cst_7 = arith.constant 6.272000e+03 : f32
    %16 = arith.divf %10, %cst_7 : f32
    %cst_8 = arith.constant 6.272000e+03 : f32
    %17 = arith.divf %15, %cst_8 : f32
    %18 = arith.mulf %16, %16 : f32
    %19 = arith.subf %17, %18 : f32
    %20 = vector.broadcast %16 : f32 to vector<2x3136xf32>
    %21 = arith.subf %6, %20 : vector<2x3136xf32>
    %cst_9 = arith.constant 9.99999974E-6 : f32
    %22 = arith.addf %19, %cst_9 : f32
    %23 = math.rsqrt %22 : f32
    %24 = vector.broadcast %23 : f32 to vector<2x3136xf32>
    %25 = arith.mulf %21, %24 : vector<2x3136xf32>
    %c0_10 = arith.constant 0 : index
    %c0_11 = arith.constant 0 : index
    %26 = vector.load %arg3[%c0_10, %c0_11] : memref<1x1xf32, #tpu.memory_space<vmem>>, vector<1x1xf32>
    %27 = vector.broadcast %26 : vector<1x1xf32> to vector<2x3136xf32>
    %28 = arith.mulf %25, %27 : vector<2x3136xf32>
    %c0_12 = arith.constant 0 : index
    %c0_13 = arith.constant 0 : index
    %29 = vector.load %arg4[%c0_12, %c0_13] : memref<1x1xf32, #tpu.memory_space<vmem>>, vector<1x1xf32>
    %30 = vector.broadcast %29 : vector<1x1xf32> to vector<2x3136xf32>
    %31 = arith.addf %28, %30 : vector<2x3136xf32>
    %cst_14 = arith.constant 0.000000e+00 : f32
    %32 = vector.broadcast %cst_14 : f32 to vector<2x3136xf32>
    %33 = arith.maximumf %31, %32 : vector<2x3136xf32>
    %c0_15 = arith.constant 0 : index
    %c0_16 = arith.constant 0 : index
    %34 = vector.load %arg5[%c0_15, %c0_16] : memref<2x3136xf32, #tpu.memory_space<vmem>>, vector<2x3136xf32>
    tpu.vector_store %arg5[%c0_15, %c0_16], %33 {strides = array<i32>} : memref<2x3136xf32, #tpu.memory_space<vmem>>, vector<2x3136xf32>,
    return
  }
}

</mosaic_0001>

<llo_original>
// kernel: tpu_custom_call.1
$region0: #{tpu_custom_call.1}
  #allocation0 [shape = 'u32[]', space=smem, size = 0x4, offset = 0x4, fixed_abs, tag = 'smem constant byte address 0x4 - core index']
  #allocation1 [shape = 'u32[144,128]{1,0:T(1,128)}', space=vmem, size = 0x12000, scoped, tag = 'internal scratch']
  #allocation2 [shape = 'f32[1,1]{1,0:T(1,128)S(1)}', space=vmem, size = 0x200, scoped, tag = 'scoped memory for tpu_custom_call.1']
  #allocation3 [shape = 'f32[1,1]{1,0:T(1,128)S(1)}', space=vmem, size = 0x200, scoped, tag = 'scoped memory for tpu_custom_call.1']
  %s0 = inlined_call_operand.vmem [shape: f32[2,100], index: 0, kind: input, shape index: {}]
  %s1 = inlined_call_operand.hbm [shape: bf16[100,3136], index: 1, kind: input, shape index: {}]
  %s2 = inlined_call_operand.hbm [shape: f32[1,3136], index: 2, kind: input, shape index: {}]
  %s3 = inlined_call_operand.<no memory space> [shape: f32[1,1], index: 3, kind: input, shape index: {}]
  %s4 = inlined_call_operand.<no memory space> [shape: f32[1,1], index: 4, kind: input, shape index: {}]
  %s5 = inlined_call_operand.hbm [shape: f32[2,3136], index: 5, kind: output, shape index: {}]
  %s6 = sld [smem:[#allocation0]]
  $region38: #{tpu_custom_call.1} parent=0
    _
  %s8 = ssub.s32 1, %s6
  %s9 = scalar_select 0, %s8, %s6
  %v10 = vstv %s3
  %11 = vst [vmem:[#allocation2] sm:$0x1] %v10
  %v12 = vstv %s4
  %13 = vst [vmem:[#allocation3] sm:$0x1] %v12
  $region1: #{tpu_custom_call.1} parent=0
    #allocation4 [shape = 'u8[665600]{0}', space=vmem, size = 0xa2800, scoped, tag = 'input window, operand 1, single buffered']
    #allocation5 [shape = 's32[1]{0}', space=sflag, size = 0x4, scoped, tag = 'scoped memory for tpu_custom_call.1']
    #allocation6 [shape = 's32[1]{0}', space=sflag, size = 0x4, scoped, tag = 'scoped memory for tpu_custom_call.1']
    #allocation7 [shape = 'u8[12800]{0}', space=vmem, size = 0x3400, scoped, tag = 'input window, operand 2, single buffered']
    #allocation8 [shape = 's32[1]{0}', space=sflag, size = 0x4, scoped, tag = 'scoped memory for tpu_custom_call.1']
    #allocation9 [shape = 'u8[25600]{0}', space=vmem, size = 0x6400, scoped, tag = 'output window, operand 0, single buffered']
    %14 = vsyncpa [#allocation5], 0
    %15 = vsyncpa [#allocation8], 0
    %16 = vsyncpa [#allocation6], 0
    // Predicated region
    $region2: #{tpu_custom_call.1} parent=1 // pred_check
      _
    $region3: #{tpu_custom_call.1} parent=1 // pred_check_branch
      %18 = sbr.rel (0) target = $region5
    $region4: #{tpu_custom_call.1} parent=1 // pred_region
      _
    $region5: #{tpu_custom_call.1} parent=1 // pred_fallthru
      _
    // Predicated region
    $region6: #{tpu_custom_call.1} parent=1 // pred_check
      _
    $region7: #{tpu_custom_call.1} parent=1 // pred_check_branch
      %20 = sbr.rel (0) target = $region9
    $region8: #{tpu_custom_call.1} parent=1 // pred_region
      %s22 = ssub.s32 20800, 20800
      %23 = vsyncadd [#allocation5], %s22
      %s24 = sshll.u32 [#allocation4], 4
      %s25 = int_to_ptr.vmem [resolvable:$true] %s24
      %30 = dma.hbm_to_vmem [thread:$0]  %s1, 20800, %s25, [#allocation5], 1600, 1600, 100
    $region9: #{tpu_custom_call.1} parent=1 // pred_fallthru
      _
    // Predicated region
    $region10: #{tpu_custom_call.1} parent=1 // pred_check
      _
    $region11: #{tpu_custom_call.1} parent=1 // pred_check_branch
      %32 = sbr.rel (0) target = $region13
    $region12: #{tpu_custom_call.1} parent=1 // pred_region
      %s34 = ssub.s32 400, 400
      %35 = vsyncadd [#allocation8], %s34
      %s37 = sshll.u32 [#allocation7], 4
      %s38 = int_to_ptr.vmem [resolvable:$true] %s37
      %40 = dma.hbm_to_vmem [thread:$0]  %s2, 400, %s38, [#allocation8]
    $region13: #{tpu_custom_call.1} parent=1 // pred_fallthru
      _
    // Predicated region
    $region14: #{tpu_custom_call.1} parent=1 // pred_check
      _
    $region15: #{tpu_custom_call.1} parent=1 // pred_check_branch
      %42 = sbr.rel (0) target = $region17
    $region16: #{tpu_custom_call.1} parent=1 // pred_region
      _
    $region17: #{tpu_custom_call.1} parent=1 // pred_fallthru
      _
    // Predicated region
    $region18: #{tpu_custom_call.1} parent=1 // pred_check
      _
    $region19: #{tpu_custom_call.1} parent=1 // pred_check_branch
      %44 = sbr.rel (0) target = $region21
    $region20: #{tpu_custom_call.1} parent=1 // pred_region
      _
    $region21: #{tpu_custom_call.1} parent=1 // pred_fallthru
      _
    // Predicated region
    $region22: #{tpu_custom_call.1} parent=1 // pred_check
      _
    $region23: #{tpu_custom_call.1} parent=1 // pred_check_branch
      %46 = sbr.rel (0) target = $region25
    $region24: #{tpu_custom_call.1} parent=1 // pred_region
      %47 = dma.done [#allocation5], 20800
    $region25: #{tpu_custom_call.1} parent=1 // pred_fallthru
      _
    // Predicated region
    $region26: #{tpu_custom_call.1} parent=1 // pred_check
      _
    $region27: #{tpu_custom_call.1} parent=1 // pred_check_branch
      %49 = sbr.rel (0) target = $region29
    $region28: #{tpu_custom_call.1} parent=1 // pred_region
      %50 = dma.done [#allocation8], 400
    $region29: #{tpu_custom_call.1} parent=1 // pred_fallthru
      _
    %v52 = vld [vmem:[%s0] sm:$0x3]
    %v53 = vpack.c.bf16 %v52, %v52
    %v54 = vld [vmem:[#allocation4] sm:$0xff]
    %v55 = vld [vmem:[#allocation4 + $0x8] sm:$0xff]
    %v56 = vld [vmem:[#allocation4 + $0x10] sm:$0xff]
    %v57 = vld [vmem:[#allocation4 + $0x18] sm:$0xff]
    %v58 = vld [vmem:[#allocation4 + $0x20] sm:$0xff]
    %v59 = vld [vmem:[#allocation4 + $0x28] sm:$0xff]
    %v60 = vld [vmem:[#allocation4 + $0x30] sm:$0xff]
    %v61 = vld [vmem:[#allocation4 + $0x38] sm:$0xff]
    %v62 = vld [vmem:[#allocation4 + $0x40] sm:$0xff]
    %v63 = vld [vmem:[#allocation4 + $0x48] sm:$0xff]
    %v64 = vld [vmem:[#allocation4 + $0x50] sm:$0xff]
    %v65 = vld [vmem:[#allocation4 + $0x58] sm:$0xff]
    %v66 = vld [vmem:[#allocation4 + $0x60] sm:$0xf]
    %v67 = vld [vmem:[#allocation4 + $0x64] sm:$0xff]
    %v68 = vld [vmem:[#allocation4 + $0x6c] sm:$0xff]
    %v69 = vld [vmem:[#allocation4 + $0x74] sm:$0xff]
    %v70 = vld [vmem:[#allocation4 + $0x7c] sm:$0xff]
    %v71 = vld [vmem:[#allocation4 + $0x84] sm:$0xff]
    %v72 = vld [vmem:[#allocation4 + $0x8c] sm:$0xff]
    %v73 = vld [vmem:[#allocation4 + $0x94] sm:$0xff]
    %v74 = vld [vmem:[#allocation4 + $0x9c] sm:$0xff]
    %v75 = vld [vmem:[#allocation4 + $0xa4] sm:$0xff]
    %v76 = vld [vmem:[#allocation4 + $0xac] sm:$0xff]
    %v77 = vld [vmem:[#allocation4 + $0xb4] sm:$0xff]
    %v78 = vld [vmem:[#allocation4 + $0xbc] sm:$0xff]
    %v79 = vld [vmem:[#allocation4 + $0xc4] sm:$0xf]
    %v80 = vld [vmem:[#allocation4 + $0xc8] sm:$0xff]
    %v81 = vld [vmem:[#allocation4 + $0xd0] sm:$0xff]
    %v82 = vld [vmem:[#allocation4 + $0xd8] sm:$0xff]
    %v83 = vld [vmem:[#allocation4 + $0xe0] sm:$0xff]
    %v84 = vld [vmem:[#allocation4 + $0xe8] sm:$0xff]
    %v85 = vld [vmem:[#allocation4 + $0xf0] sm:$0xff]
    %v86 = vld [vmem:[#allocation4 + $0xf8] sm:$0xff]
    %v87 = vld [vmem:[#allocation4 + $0x100] sm:$0xff]
    %v88 = vld [vmem:[#allocation4 + $0x108] sm:$0xff]
    %v89 = vld [vmem:[#allocation4 + $0x110] sm:$0xff]
    %v90 = vld [vmem:[#allocation4 + $0x118] sm:$0xff]
    %v91 = vld [vmem:[#allocation4 + $0x120] sm:$0xff]
    %v92 = vld [vmem:[#allocation4 + $0x128] sm:$0xf]
    %v93 = vld [vmem:[#allocation4 + $0x12c] sm:$0xff]
    %v94 = vld [vmem:[#allocation4 + $0x134] sm:$0xff]
    %v95 = vld [vmem:[#allocation4 + $0x13c] sm:$0xff]
    %v96 = vld [vmem:[#allocation4 + $0x144] sm:$0xff]
    %v97 = vld [vmem:[#allocation4 + $0x14c] sm:$0xff]
    %v98 = vld [vmem:[#allocation4 + $0x154] sm:$0xff]
    %v99 = vld [vmem:[#allocation4 + $0x15c] sm:$0xff]
    %v100 = vld [vmem:[#allocation4 + $0x164] sm:$0xff]
    %v101 = vld [vmem:[#allocation4 + $0x16c] sm:$0xff]
    %v102 = vld [vmem:[#allocation4 + $0x174] sm:$0xff]
    %v103 = vld [vmem:[#allocation4 + $0x17c] sm:$0xff]
    %v104 = vld [vmem:[#allocation4 + $0x184] sm:$0xff]
    %v105 = vld [vmem:[#allocation4 + $0x18c] sm:$0xf]
    %v106 = vld [vmem:[#allocation4 + $0x190] sm:$0xff]
    %v107 = vld [vmem:[#allocation4 + $0x198] sm:$0xff]
    %v108 = vld [vmem:[#allocation4 + $0x1a0] sm:$0xff]
    %v109 = vld [vmem:[#allocation4 + $0x1a8] sm:$0xff]
    %v110 = vld [vmem:[#allocation4 + $0x1b0] sm:$0xff]
    %v111 = vld [vmem:[#allocation4 + $0x1b8] sm:$0xff]
    %v112 = vld [vmem:[#allocation4 + $0x1c0] sm:$0xff]
    %v113 = vld [vmem:[#allocation4 + $0x1c8] sm:$0xff]
    %v114 = vld [vmem:[#allocation4 + $0x1d0] sm:$0xff]
    %v115 = vld [vmem:[#allocation4 + $0x1d8] sm:$0xff]
    %v116 = vld [vmem:[#allocation4 + $0x1e0] sm:$0xff]
    %v117 = vld [vmem:[#allocation4 + $0x1e8] sm:$0xff]
    %v118 = vld [vmem:[#allocation4 + $0x1f0] sm:$0xf]
    %v119 = vld [vmem:[#allocation4 + $0x1f4] sm:$0xff]
    %v120 = vld [vmem:[#allocation4 + $0x1fc] sm:$0xff]
    %v121 = vld [vmem:[#allocation4 + $0x204] sm:$0xff]
    %v122 = vld [vmem:[#allocation4 + $0x20c] sm:$0xff]
    %v123 = vld [vmem:[#allocation4 + $0x214] sm:$0xff]
    %v124 = vld [vmem:[#allocation4 + $0x21c] sm:$0xff]
    %v125 = vld [vmem:[#allocation4 + $0x224] sm:$0xff]
    %v126 = vld [vmem:[#allocation4 + $0x22c] sm:$0xff]
    %v127 = vld [vmem:[#allocation4 + $0x234] sm:$0xff]
    %v128 = vld [vmem:[#allocation4 + $0x23c] sm:$0xff]
    %v129 = vld [vmem:[#allocation4 + $0x244] sm:$0xff]
    %v130 = vld [vmem:[#allocation4 + $0x24c] sm:$0xff]
    %v131 = vld [vmem:[#allocation4 + $0x254] sm:$0xf]
    %v132 = vld [vmem:[#allocation4 + $0x258] sm:$0xff]
    %v133 = vld [vmem:[#allocation4 + $0x260] sm:$0xff]
    %v134 = vld [vmem:[#allocation4 + $0x268] sm:$0xff]
    %v135 = vld [vmem:[#allocation4 + $0x270] sm:$0xff]
    %v136 = vld [vmem:[#allocation4 + $0x278] sm:$0xff]
    %v137 = vld [vmem:[#allocation4 + $0x280] sm:$0xff]
    %v138 = vld [vmem:[#allocation4 + $0x288] sm:$0xff]
    %v139 = vld [vmem:[#allocation4 + $0x290] sm:$0xff]
    %v140 = vld [vmem:[#allocation4 + $0x298] sm:$0xff]
    %v141 = vld [vmem:[#allocation4 + $0x2a0] sm:$0xff]
    %v142 = vld [vmem:[#allocation4 + $0x2a8] sm:$0xff]
    %v143 = vld [vmem:[#allocation4 + $0x2b0] sm:$0xff]
    %v144 = vld [vmem:[#allocation4 + $0x2b8] sm:$0xf]
    %v145 = vld [vmem:[#allocation4 + $0x2bc] sm:$0xff]
    %v146 = vld [vmem:[#allocation4 + $0x2c4] sm:$0xff]
    %v147 = vld [vmem:[#allocation4 + $0x2cc] sm:$0xff]
    %v148 = vld [vmem:[#allocation4 + $0x2d4] sm:$0xff]
    %v149 = vld [vmem:[#allocation4 + $0x2dc] sm:$0xff]
    %v150 = vld [vmem:[#allocation4 + $0x2e4] sm:$0xff]
    %v151 = vld [vmem:[#allocation4 + $0x2ec] sm:$0xff]
    %v152 = vld [vmem:[#allocation4 + $0x2f4] sm:$0xff]
    %v153 = vld [vmem:[#allocation4 + $0x2fc] sm:$0xff]
    %v154 = vld [vmem:[#allocation4 + $0x304] sm:$0xff]
    %v155 = vld [vmem:[#allocation4 + $0x30c] sm:$0xff]
    %v156 = vld [vmem:[#allocation4 + $0x314] sm:$0xff]
    %v157 = vld [vmem:[#allocation4 + $0x31c] sm:$0xf]
    %v158 = vld [vmem:[#allocation4 + $0x320] sm:$0xff]
    %v159 = vld [vmem:[#allocation4 + $0x328] sm:$0xff]
    %v160 = vld [vmem:[#allocation4 + $0x330] sm:$0xff]
    %v161 = vld [vmem:[#allocation4 + $0x338] sm:$0xff]
    %v162 = vld [vmem:[#allocation4 + $0x340] sm:$0xff]
    %v163 = vld [vmem:[#allocation4 + $0x348] sm:$0xff]
    %v164 = vld [vmem:[#allocation4 + $0x350] sm:$0xff]
    %v165 = vld [vmem:[#allocation4 + $0x358] sm:$0xff]
    %v166 = vld [vmem:[#allocation4 + $0x360] sm:$0xff]
    %v167 = vld [vmem:[#allocation4 + $0x368] sm:$0xff]
    %v168 = vld [vmem:[#allocation4 + $0x370] sm:$0xff]
    %v169 = vld [vmem:[#allocation4 + $0x378] sm:$0xff]
    %v170 = vld [vmem:[#allocation4 + $0x380] sm:$0xf]
    %v171 = vld [vmem:[#allocation4 + $0x384] sm:$0xff]
    %v172 = vld [vmem:[#allocation4 + $0x38c] sm:$0xff]
    %v173 = vld [vmem:[#allocation4 + $0x394] sm:$0xff]
    %v174 = vld [vmem:[#allocation4 + $0x39c] sm:$0xff]
    %v175 = vld [vmem:[#allocation4 + $0x3a4] sm:$0xff]
    %v176 = vld [vmem:[#allocation4 + $0x3ac] sm:$0xff]
    %v177 = vld [vmem:[#allocation4 + $0x3b4] sm:$0xff]
    %v178 = vld [vmem:[#allocation4 + $0x3bc] sm:$0xff]
    %v179 = vld [vmem:[#allocation4 + $0x3c4] sm:$0xff]
    %v180 = vld [vmem:[#allocation4 + $0x3cc] sm:$0xff]
    %v181 = vld [vmem:[#allocation4 + $0x3d4] sm:$0xff]
    %v182 = vld [vmem:[#allocation4 + $0x3dc] sm:$0xff]
    %v183 = vld [vmem:[#allocation4 + $0x3e4] sm:$0xf]
    %v184 = vld [vmem:[#allocation4 + $0x3e8] sm:$0xff]
    %v185 = vld [vmem:[#allocation4 + $0x3f0] sm:$0xff]
    %v186 = vld [vmem:[#allocation4 + $0x3f8] sm:$0xff]
    %v187 = vld [vmem:[#allocation4 + $0x400] sm:$0xff]
    %v188 = vld [vmem:[#allocation4 + $0x408] sm:$0xff]
    %v189 = vld [vmem:[#allocation4 + $0x410] sm:$0xff]
    %v190 = vld [vmem:[#allocation4 + $0x418] sm:$0xff]
    %v191 = vld [vmem:[#allocation4 + $0x420] sm:$0xff]
    %v192 = vld [vmem:[#allocation4 + $0x428] sm:$0xff]
    %v193 = vld [vmem:[#allocation4 + $0x430] sm:$0xff]
    %v194 = vld [vmem:[#allocation4 + $0x438] sm:$0xff]
    %v195 = vld [vmem:[#allocation4 + $0x440] sm:$0xff]
    %v196 = vld [vmem:[#allocation4 + $0x448] sm:$0xf]
    %v197 = vld [vmem:[#allocation4 + $0x44c] sm:$0xff]
    %v198 = vld [vmem:[#allocation4 + $0x454] sm:$0xff]
    %v199 = vld [vmem:[#allocation4 + $0x45c] sm:$0xff]
    %v200 = vld [vmem:[#allocation4 + $0x464] sm:$0xff]
    %v201 = vld [vmem:[#allocation4 + $0x46c] sm:$0xff]
    %v202 = vld [vmem:[#allocation4 + $0x474] sm:$0xff]
    %v203 = vld [vmem:[#allocation4 + $0x47c] sm:$0xff]
    %v204 = vld [vmem:[#allocation4 + $0x484] sm:$0xff]
    %v205 = vld [vmem:[#allocation4 + $0x48c] sm:$0xff]
    %v206 = vld [vmem:[#allocation4 + $0x494] sm:$0xff]
    %v207 = vld [vmem:[#allocation4 + $0x49c] sm:$0xff]
    %v208 = vld [vmem:[#allocation4 + $0x4a4] sm:$0xff]
    %v209 = vld [vmem:[#allocation4 + $0x4ac] sm:$0xf]
    %v210 = vld [vmem:[#allocation4 + $0x4b0] sm:$0x33]
    %v211 = vld [vmem:[#allocation4 + $0x4b8] sm:$0x33]
    %v212 = vld [vmem:[#allocation4 + $0x4c0] sm:$0x33]
    %v213 = vld [vmem:[#allocation4 + $0x4c8] sm:$0x33]
    %v214 = vld [vmem:[#allocation4 + $0x4d0] sm:$0x33]
    %v215 = vld [vmem:[#allocation4 + $0x4d8] sm:$0x33]
    %v216 = vld [vmem:[#allocation4 + $0x4e0] sm:$0x33]
    %v217 = vld [vmem:[#allocation4 + $0x4e8] sm:$0x33]
    %v218 = vld [vmem:[#allocation4 + $0x4f0] sm:$0x33]
    %v219 = vld [vmem:[#allocation4 + $0x4f8] sm:$0x33]
    %v220 = vld [vmem:[#allocation4 + $0x500] sm:$0x33]
    %v221 = vld [vmem:[#allocation4 + $0x508] sm:$0x33]
    %v222 = vld [vmem:[#allocation4 + $0x510] sm:$0x3]
    %v223 = vld [vmem:[#allocation7] sm:$0xff]
    %v224 = vld [vmem:[#allocation7 + $0x8] sm:$0xff]
    %v225 = vld [vmem:[#allocation7 + $0x10] sm:$0xff]
    %v226 = vld [vmem:[#allocation7 + $0x18] sm:$0x1]
    %v231 = vlaneseq
    %v232 = vshrl.u32 %v231, 7
    %v233 = vsub.s32 0, %v232
    %v234 = vrot.slane %v223, %v233
    %v235 = vlaneseq
    %v236 = vshrl.u32 %v235, 7
    %v237 = vsub.s32 1, %v236
    %v238 = vrot.slane %v223, %v237
    %v239 = vlaneseq
    %v240 = vshrl.u32 %v239, 7
    %v241 = vsub.s32 2, %v240
    %v242 = vrot.slane %v223, %v241
    %v243 = vlaneseq
    %v244 = vshrl.u32 %v243, 7
    %v245 = vsub.s32 3, %v244
    %v246 = vrot.slane %v223, %v245
    %v247 = vlaneseq
    %v248 = vshrl.u32 %v247, 7
    %v249 = vsub.s32 4, %v248
    %v250 = vrot.slane %v223, %v249
    %v251 = vlaneseq
    %v252 = vshrl.u32 %v251, 7
    %v253 = vsub.s32 5, %v252
    %v254 = vrot.slane %v223, %v253
    %v255 = vlaneseq
    %v256 = vshrl.u32 %v255, 7
    %v257 = vsub.s32 6, %v256
    %v258 = vrot.slane %v223, %v257
    %v259 = vlaneseq
    %v260 = vshrl.u32 %v259, 7
    %v261 = vsub.s32 7, %v260
    %v262 = vrot.slane %v223, %v261
    %v263 = vlaneseq
    %v264 = vshrl.u32 %v263, 7
    %v265 = vsub.s32 0, %v264
    %v266 = vrot.slane %v224, %v265
    %v267 = vlaneseq
    %v268 = vshrl.u32 %v267, 7
    %v269 = vsub.s32 1, %v268
    %v270 = vrot.slane %v224, %v269
    %v271 = vlaneseq
    %v272 = vshrl.u32 %v271, 7
    %v273 = vsub.s32 2, %v272
    %v274 = vrot.slane %v224, %v273
    %v275 = vlaneseq
    %v276 = vshrl.u32 %v275, 7
    %v277 = vsub.s32 3, %v276
    %v278 = vrot.slane %v224, %v277
    %v279 = vlaneseq
    %v280 = vshrl.u32 %v279, 7
    %v281 = vsub.s32 4, %v280
    %v282 = vrot.slane %v224, %v281
    %v283 = vlaneseq
    %v284 = vshrl.u32 %v283, 7
    %v285 = vsub.s32 5, %v284
    %v286 = vrot.slane %v224, %v285
    %v287 = vlaneseq
    %v288 = vshrl.u32 %v287, 7
    %v289 = vsub.s32 6, %v288
    %v290 = vrot.slane %v224, %v289
    %v291 = vlaneseq
    %v292 = vshrl.u32 %v291, 7
    %v293 = vsub.s32 7, %v292
    %v294 = vrot.slane %v224, %v293
    %v295 = vlaneseq
    %v296 = vshrl.u32 %v295, 7
    %v297 = vsub.s32 0, %v296
    %v298 = vrot.slane %v225, %v297
    %v299 = vlaneseq
    %v300 = vshrl.u32 %v299, 7
    %v301 = vsub.s32 1, %v300
    %v302 = vrot.slane %v225, %v301
    %v303 = vlaneseq
    %v304 = vshrl.u32 %v303, 7
    %v305 = vsub.s32 2, %v304
    %v306 = vrot.slane %v225, %v305
    %v307 = vlaneseq
    %v308 = vshrl.u32 %v307, 7
    %v309 = vsub.s32 3, %v308
    %v310 = vrot.slane %v225, %v309
    %v311 = vlaneseq
    %v312 = vshrl.u32 %v311, 7
    %v313 = vsub.s32 4, %v312
    %v314 = vrot.slane %v225, %v313
    %v315 = vlaneseq
    %v316 = vshrl.u32 %v315, 7
    %v317 = vsub.s32 5, %v316
    %v318 = vrot.slane %v225, %v317
    %v319 = vlaneseq
    %v320 = vshrl.u32 %v319, 7
    %v321 = vsub.s32 6, %v320
    %v322 = vrot.slane %v225, %v321
    %v323 = vlaneseq
    %v324 = vshrl.u32 %v323, 7
    %v325 = vsub.s32 7, %v324
    %v326 = vrot.slane %v225, %v325
    %v327 = vlaneseq
    %v328 = vshrl.u32 %v327, 7
    %v329 = vsub.s32 0, %v328
    %v330 = vrot.slane %v226, %v329
    %v525 = vunpack.c.l.b16 %v54
    %v526 = vunpack.c.h.b16 %v54
    %v527 = vunpack.c.l.b16 %v55
    %v528 = vunpack.c.h.b16 %v55
    %v529 = vunpack.c.l.b16 %v56
    %v530 = vunpack.c.h.b16 %v56
    %v531 = vunpack.c.l.b16 %v57
    %v532 = vunpack.c.h.b16 %v57
    %v533 = vunpack.c.l.b16 %v58
    %v534 = vunpack.c.h.b16 %v58
    %v535 = vunpack.c.l.b16 %v59
    %v536 = vunpack.c.h.b16 %v59
    %v537 = vunpack.c.l.b16 %v60
    %v538 = vunpack.c.h.b16 %v60
    %v539 = vunpack.c.l.b16 %v61
    %v540 = vunpack.c.h.b16 %v61
    %v541 = vunpack.c.l.b16 %v62
    %v542 = vunpack.c.h.b16 %v62
    %v543 = vunpack.c.l.b16 %v63
    %v544 = vunpack.c.h.b16 %v63
    %v545 = vunpack.c.l.b16 %v64
    %v546 = vunpack.c.h.b16 %v64
    %v547 = vunpack.c.l.b16 %v65
    %v548 = vunpack.c.h.b16 %v65
    %v549 = vunpack.c.l.b16 %v66
    %v550 = vunpack.c.l.b16 %v67
    %v551 = vunpack.c.h.b16 %v67
    %v552 = vunpack.c.l.b16 %v68
    %v553 = vunpack.c.h.b16 %v68
    %v554 = vunpack.c.l.b16 %v69
    %v555 = vunpack.c.h.b16 %v69
    %v556 = vunpack.c.l.b16 %v70
    %v557 = vunpack.c.h.b16 %v70
    %v558 = vunpack.c.l.b16 %v71
    %v559 = vunpack.c.h.b16 %v71
    %v560 = vunpack.c.l.b16 %v72
    %v561 = vunpack.c.h.b16 %v72
    %v562 = vunpack.c.l.b16 %v73
    %v563 = vunpack.c.h.b16 %v73
    %v564 = vunpack.c.l.b16 %v74
    %v565 = vunpack.c.h.b16 %v74
    %v566 = vunpack.c.l.b16 %v75
    %v567 = vunpack.c.h.b16 %v75
    %v568 = vunpack.c.l.b16 %v76
    %v569 = vunpack.c.h.b16 %v76
    %v570 = vunpack.c.l.b16 %v77
    %v571 = vunpack.c.h.b16 %v77
    %v572 = vunpack.c.l.b16 %v78
    %v573 = vunpack.c.h.b16 %v78
    %v574 = vunpack.c.l.b16 %v79
    %v575 = vunpack.c.l.b16 %v80
    %v576 = vunpack.c.h.b16 %v80
    %v577 = vunpack.c.l.b16 %v81
    %v578 = vunpack.c.h.b16 %v81
    %v579 = vunpack.c.l.b16 %v82
    %v580 = vunpack.c.h.b16 %v82
    %v581 = vunpack.c.l.b16 %v83
    %v582 = vunpack.c.h.b16 %v83
    %v583 = vunpack.c.l.b16 %v84
    %v584 = vunpack.c.h.b16 %v84
    %v585 = vunpack.c.l.b16 %v85
    %v586 = vunpack.c.h.b16 %v85
    %v587 = vunpack.c.l.b16 %v86
    %v588 = vunpack.c.h.b16 %v86
    %v589 = vunpack.c.l.b16 %v87
    %v590 = vunpack.c.h.b16 %v87
    %v591 = vunpack.c.l.b16 %v88
    %v592 = vunpack.c.h.b16 %v88
    %v593 = vunpack.c.l.b16 %v89
    %v594 = vunpack.c.h.b16 %v89
    %v595 = vunpack.c.l.b16 %v90
    %v596 = vunpack.c.h.b16 %v90
    %v597 = vunpack.c.l.b16 %v91
    %v598 = vunpack.c.h.b16 %v91
    %v599 = vunpack.c.l.b16 %v92
    %v600 = vunpack.c.l.b16 %v93
    %v601 = vunpack.c.h.b16 %v93
    %v602 = vunpack.c.l.b16 %v94
    %v603 = vunpack.c.h.b16 %v94
    %v604 = vunpack.c.l.b16 %v95
    %v605 = vunpack.c.h.b16 %v95
    %v606 = vunpack.c.l.b16 %v96
    %v607 = vunpack.c.h.b16 %v96
    %v608 = vunpack.c.l.b16 %v97
    %v609 = vunpack.c.h.b16 %v97
    %v610 = vunpack.c.l.b16 %v98
    %v611 = vunpack.c.h.b16 %v98
    %v612 = vunpack.c.l.b16 %v99
    %v613 = vunpack.c.h.b16 %v99
    %v614 = vunpack.c.l.b16 %v100
    %v615 = vunpack.c.h.b16 %v100
    %v616 = vunpack.c.l.b16 %v101
    %v617 = vunpack.c.h.b16 %v101
    %v618 = vunpack.c.l.b16 %v102
    %v619 = vunpack.c.h.b16 %v102
    %v620 = vunpack.c.l.b16 %v103
    %v621 = vunpack.c.h.b16 %v103
    %v622 = vunpack.c.l.b16 %v104
    %v623 = vunpack.c.h.b16 %v104
    %v624 = vunpack.c.l.b16 %v105
    %v625 = vunpack.c.l.b16 %v106
    %v626 = vunpack.c.h.b16 %v106
    %v627 = vunpack.c.l.b16 %v107
    %v628 = vunpack.c.h.b16 %v107
    %v629 = vunpack.c.l.b16 %v108
    %v630 = vunpack.c.h.b16 %v108
    %v631 = vunpack.c.l.b16 %v109
    %v632 = vunpack.c.h.b16 %v109
    %v633 = vunpack.c.l.b16 %v110
    %v634 = vunpack.c.h.b16 %v110
    %v635 = vunpack.c.l.b16 %v111
    %v636 = vunpack.c.h.b16 %v111
    %v637 = vunpack.c.l.b16 %v112
    %v638 = vunpack.c.h.b16 %v112
    %v639 = vunpack.c.l.b16 %v113
    %v640 = vunpack.c.h.b16 %v113
    %v641 = vunpack.c.l.b16 %v114
    %v642 = vunpack.c.h.b16 %v114
    %v643 = vunpack.c.l.b16 %v115
    %v644 = vunpack.c.h.b16 %v115
    %v645 = vunpack.c.l.b16 %v116
    %v646 = vunpack.c.h.b16 %v116
    %v647 = vunpack.c.l.b16 %v117
    %v648 = vunpack.c.h.b16 %v117
    %v649 = vunpack.c.l.b16 %v118
    %v650 = vunpack.c.l.b16 %v119
    %v651 = vunpack.c.h.b16 %v119
    %v652 = vunpack.c.l.b16 %v120
    %v653 = vunpack.c.h.b16 %v120
    %v654 = vunpack.c.l.b16 %v121
    %v655 = vunpack.c.h.b16 %v121
    %v656 = vunpack.c.l.b16 %v122
    %v657 = vunpack.c.h.b16 %v122
    %v658 = vunpack.c.l.b16 %v123
    %v659 = vunpack.c.h.b16 %v123
    %v660 = vunpack.c.l.b16 %v124
    %v661 = vunpack.c.h.b16 %v124
    %v662 = vunpack.c.l.b16 %v125
    %v663 = vunpack.c.h.b16 %v125
    %v664 = vunpack.c.l.b16 %v126
    %v665 = vunpack.c.h.b16 %v126
    %v666 = vunpack.c.l.b16 %v127
    %v667 = vunpack.c.h.b16 %v127
    %v668 = vunpack.c.l.b16 %v128
    %v669 = vunpack.c.h.b16 %v128
    %v670 = vunpack.c.l.b16 %v129
    %v671 = vunpack.c.h.b16 %v129
    %v672 = vunpack.c.l.b16 %v130
    %v673 = vunpack.c.h.b16 %v130
    %v674 = vunpack.c.l.b16 %v131
    %v675 = vunpack.c.l.b16 %v132
    %v676 = vunpack.c.h.b16 %v132
    %v677 = vunpack.c.l.b16 %v133
    %v678 = vunpack.c.h.b16 %v133
    %v679 = vunpack.c.l.b16 %v134
    %v680 = vunpack.c.h.b16 %v134
    %v681 = vunpack.c.l.b16 %v135
    %v682 = vunpack.c.h.b16 %v135
    %v683 = vunpack.c.l.b16 %v136
    %v684 = vunpack.c.h.b16 %v136
    %v685 = vunpack.c.l.b16 %v137
    %v686 = vunpack.c.h.b16 %v137
    %v687 = vunpack.c.l.b16 %v138
    %v688 = vunpack.c.h.b16 %v138
    %v689 = vunpack.c.l.b16 %v139
    %v690 = vunpack.c.h.b16 %v139
    %v691 = vunpack.c.l.b16 %v140
    %v692 = vunpack.c.h.b16 %v140
    %v693 = vunpack.c.l.b16 %v141
    %v694 = vunpack.c.h.b16 %v141
    %v695 = vunpack.c.l.b16 %v142
    %v696 = vunpack.c.h.b16 %v142
    %v697 = vunpack.c.l.b16 %v143
    %v698 = vunpack.c.h.b16 %v143
    %v699 = vunpack.c.l.b16 %v144
    %v700 = vunpack.c.l.b16 %v145
    %v701 = vunpack.c.h.b16 %v145
    %v702 = vunpack.c.l.b16 %v146
    %v703 = vunpack.c.h.b16 %v146
    %v704 = vunpack.c.l.b16 %v147
    %v705 = vunpack.c.h.b16 %v147
    %v706 = vunpack.c.l.b16 %v148
    %v707 = vunpack.c.h.b16 %v148
    %v708 = vunpack.c.l.b16 %v149
    %v709 = vunpack.c.h.b16 %v149
    %v710 = vunpack.c.l.b16 %v150
    %v711 = vunpack.c.h.b16 %v150
    %v712 = vunpack.c.l.b16 %v151
    %v713 = vunpack.c.h.b16 %v151
    %v714 = vunpack.c.l.b16 %v152
    %v715 = vunpack.c.h.b16 %v152
    %v716 = vunpack.c.l.b16 %v153
    %v717 = vunpack.c.h.b16 %v153
    %v718 = vunpack.c.l.b16 %v154
    %v719 = vunpack.c.h.b16 %v154
    %v720 = vunpack.c.l.b16 %v155
    %v721 = vunpack.c.h.b16 %v155
    %v722 = vunpack.c.l.b16 %v156
    %v723 = vunpack.c.h.b16 %v156
    %v724 = vunpack.c.l.b16 %v157
    %v725 = vunpack.c.l.b16 %v158
    %v726 = vunpack.c.h.b16 %v158
    %v727 = vunpack.c.l.b16 %v159
    %v728 = vunpack.c.h.b16 %v159
    %v729 = vunpack.c.l.b16 %v160
    %v730 = vunpack.c.h.b16 %v160
    %v731 = vunpack.c.l.b16 %v161
    %v732 = vunpack.c.h.b16 %v161
    %v733 = vunpack.c.l.b16 %v162
    %v734 = vunpack.c.h.b16 %v162
    %v735 = vunpack.c.l.b16 %v163
    %v736 = vunpack.c.h.b16 %v163
    %v737 = vunpack.c.l.b16 %v164
    %v738 = vunpack.c.h.b16 %v164
    %v739 = vunpack.c.l.b16 %v165
    %v740 = vunpack.c.h.b16 %v165
    %v741 = vunpack.c.l.b16 %v166
    %v742 = vunpack.c.h.b16 %v166
    %v743 = vunpack.c.l.b16 %v167
    %v744 = vunpack.c.h.b16 %v167
    %v745 = vunpack.c.l.b16 %v168
    %v746 = vunpack.c.h.b16 %v168
    %v747 = vunpack.c.l.b16 %v169
    %v748 = vunpack.c.h.b16 %v169
    %v749 = vunpack.c.l.b16 %v170
    %v750 = vunpack.c.l.b16 %v171
    %v751 = vunpack.c.h.b16 %v171
    %v752 = vunpack.c.l.b16 %v172
    %v753 = vunpack.c.h.b16 %v172
    %v754 = vunpack.c.l.b16 %v173
    %v755 = vunpack.c.h.b16 %v173
    %v756 = vunpack.c.l.b16 %v174
    %v757 = vunpack.c.h.b16 %v174
    %v758 = vunpack.c.l.b16 %v175
    %v759 = vunpack.c.h.b16 %v175
    %v760 = vunpack.c.l.b16 %v176
    %v761 = vunpack.c.h.b16 %v176
    %v762 = vunpack.c.l.b16 %v177
    %v763 = vunpack.c.h.b16 %v177
    %v764 = vunpack.c.l.b16 %v178
    %v765 = vunpack.c.h.b16 %v178
    %v766 = vunpack.c.l.b16 %v179
    %v767 = vunpack.c.h.b16 %v179
    %v768 = vunpack.c.l.b16 %v180
    %v769 = vunpack.c.h.b16 %v180
    %v770 = vunpack.c.l.b16 %v181
    %v771 = vunpack.c.h.b16 %v181
    %v772 = vunpack.c.l.b16 %v182
    %v773 = vunpack.c.h.b16 %v182
    %v774 = vunpack.c.l.b16 %v183
    %v775 = vunpack.c.l.b16 %v184
    %v776 = vunpack.c.h.b16 %v184
    %v777 = vunpack.c.l.b16 %v185
    %v778 = vunpack.c.h.b16 %v185
    %v779 = vunpack.c.l.b16 %v186
    %v780 = vunpack.c.h.b16 %v186
    %v781 = vunpack.c.l.b16 %v187
    %v782 = vunpack.c.h.b16 %v187
    %v783 = vunpack.c.l.b16 %v188
    %v784 = vunpack.c.h.b16 %v188
    %v785 = vunpack.c.l.b16 %v189
    %v786 = vunpack.c.h.b16 %v189
    %v787 = vunpack.c.l.b16 %v190
    %v788 = vunpack.c.h.b16 %v190
    %v789 = vunpack.c.l.b16 %v191
    %v790 = vunpack.c.h.b16 %v191
    %v791 = vunpack.c.l.b16 %v192
    %v792 = vunpack.c.h.b16 %v192
    %v793 = vunpack.c.l.b16 %v193
    %v794 = vunpack.c.h.b16 %v193
    %v795 = vunpack.c.l.b16 %v194
    %v796 = vunpack.c.h.b16 %v194
    %v797 = vunpack.c.l.b16 %v195
    %v798 = vunpack.c.h.b16 %v195
    %v799 = vunpack.c.l.b16 %v196
    %v800 = vunpack.c.l.b16 %v197
    %v801 = vunpack.c.h.b16 %v197
    %v802 = vunpack.c.l.b16 %v198
    %v803 = vunpack.c.h.b16 %v198
    %v804 = vunpack.c.l.b16 %v199
    %v805 = vunpack.c.h.b16 %v199
    %v806 = vunpack.c.l.b16 %v200
    %v807 = vunpack.c.h.b16 %v200
    %v808 = vunpack.c.l.b16 %v201
    %v809 = vunpack.c.h.b16 %v201
    %v810 = vunpack.c.l.b16 %v202
    %v811 = vunpack.c.h.b16 %v202
    %v812 = vunpack.c.l.b16 %v203
    %v813 = vunpack.c.h.b16 %v203
    %v814 = vunpack.c.l.b16 %v204
    %v815 = vunpack.c.h.b16 %v204
    %v816 = vunpack.c.l.b16 %v205
    %v817 = vunpack.c.h.b16 %v205
    %v818 = vunpack.c.l.b16 %v206
    %v819 = vunpack.c.h.b16 %v206
    %v820 = vunpack.c.l.b16 %v207
    %v821 = vunpack.c.h.b16 %v207
    %v822 = vunpack.c.l.b16 %v208
    %v823 = vunpack.c.h.b16 %v208
    %v824 = vunpack.c.l.b16 %v209
    %v825 = vunpack.c.l.b16 %v210
    %v826 = vunpack.c.h.b16 %v210
    %v827 = vunpack.c.l.b16 %v211
    %v828 = vunpack.c.h.b16 %v211
    %v829 = vunpack.c.l.b16 %v212
    %v830 = vunpack.c.h.b16 %v212
    %v831 = vunpack.c.l.b16 %v213
    %v832 = vunpack.c.h.b16 %v213
    %v833 = vunpack.c.l.b16 %v214
    %v834 = vunpack.c.h.b16 %v214
    %v835 = vunpack.c.l.b16 %v215
    %v836 = vunpack.c.h.b16 %v215
    %v837 = vunpack.c.l.b16 %v216
    %v838 = vunpack.c.h.b16 %v216
    %v839 = vunpack.c.l.b16 %v217
    %v840 = vunpack.c.h.b16 %v217
    %v841 = vunpack.c.l.b16 %v218
    %v842 = vunpack.c.h.b16 %v218
    %v843 = vunpack.c.l.b16 %v219
    %v844 = vunpack.c.h.b16 %v219
    %v845 = vunpack.c.l.b16 %v220
    %v846 = vunpack.c.h.b16 %v220
    %v847 = vunpack.c.l.b16 %v221
    %v848 = vunpack.c.h.b16 %v221
    %v849 = vunpack.c.l.b16 %v222
    %v850 = vpack.c.b16 %v550, %v525
    %v851 = vpack.c.b16 %v551, %v526
    %v852 = vpack.c.b16 %v552, %v527
    %v853 = vpack.c.b16 %v553, %v528
    %v854 = vpack.c.b16 %v554, %v529
    %v855 = vpack.c.b16 %v555, %v530
    %v856 = vpack.c.b16 %v556, %v531
    %v857 = vpack.c.b16 %v557, %v532
    %v858 = vpack.c.b16 %v558, %v533
    %v859 = vpack.c.b16 %v559, %v534
    %v860 = vpack.c.b16 %v560, %v535
    %v861 = vpack.c.b16 %v561, %v536
    %v862 = vpack.c.b16 %v562, %v537
    %v863 = vpack.c.b16 %v563, %v538
    %v864 = vpack.c.b16 %v564, %v539
    %v865 = vpack.c.b16 %v565, %v540
    %v866 = vpack.c.b16 %v566, %v541
    %v867 = vpack.c.b16 %v567, %v542
    %v868 = vpack.c.b16 %v568, %v543
    %v869 = vpack.c.b16 %v569, %v544
    %v870 = vpack.c.b16 %v570, %v545
    %v871 = vpack.c.b16 %v571, %v546
    %v872 = vpack.c.b16 %v572, %v547
    %v873 = vpack.c.b16 %v573, %v548
    %v874 = vpack.c.b16 %v574, %v549
    %v875 = vpack.c.b16 %v600, %v575
    %v876 = vpack.c.b16 %v601, %v576
    %v877 = vpack.c.b16 %v602, %v577
    %v878 = vpack.c.b16 %v603, %v578
    %v879 = vpack.c.b16 %v604, %v579
    %v880 = vpack.c.b16 %v605, %v580
    %v881 = vpack.c.b16 %v606, %v581
    %v882 = vpack.c.b16 %v607, %v582
    %v883 = vpack.c.b16 %v608, %v583
    %v884 = vpack.c.b16 %v609, %v584
    %v885 = vpack.c.b16 %v610, %v585
    %v886 = vpack.c.b16 %v611, %v586
    %v887 = vpack.c.b16 %v612, %v587
    %v888 = vpack.c.b16 %v613, %v588
    %v889 = vpack.c.b16 %v614, %v589
    %v890 = vpack.c.b16 %v615, %v590
    %v891 = vpack.c.b16 %v616, %v591
    %v892 = vpack.c.b16 %v617, %v592
    %v893 = vpack.c.b16 %v618, %v593
    %v894 = vpack.c.b16 %v619, %v594
    %v895 = vpack.c.b16 %v620, %v595
    %v896 = vpack.c.b16 %v621, %v596
    %v897 = vpack.c.b16 %v622, %v597
    %v898 = vpack.c.b16 %v623, %v598
    %v899 = vpack.c.b16 %v624, %v599
    %v900 = vpack.c.b16 %v650, %v625
    %v901 = vpack.c.b16 %v651, %v626
    %v902 = vpack.c.b16 %v652, %v627
    %v903 = vpack.c.b16 %v653, %v628
    %v904 = vpack.c.b16 %v654, %v629
    %v905 = vpack.c.b16 %v655, %v630
    %v906 = vpack.c.b16 %v656, %v631
    %v907 = vpack.c.b16 %v657, %v632
    %v908 = vpack.c.b16 %v658, %v633
    %v909 = vpack.c.b16 %v659, %v634
    %v910 = vpack.c.b16 %v660, %v635
    %v911 = vpack.c.b16 %v661, %v636
    %v912 = vpack.c.b16 %v662, %v637
    %v913 = vpack.c.b16 %v663, %v638
    %v914 = vpack.c.b16 %v664, %v639
    %v915 = vpack.c.b16 %v665, %v640
    %v916 = vpack.c.b16 %v666, %v641
    %v917 = vpack.c.b16 %v667, %v642
    %v918 = vpack.c.b16 %v668, %v643
    %v919 = vpack.c.b16 %v669, %v644
    %v920 = vpack.c.b16 %v670, %v645
    %v921 = vpack.c.b16 %v671, %v646
    %v922 = vpack.c.b16 %v672, %v647
    %v923 = vpack.c.b16 %v673, %v648
    %v924 = vpack.c.b16 %v674, %v649
    %v925 = vpack.c.b16 %v700, %v675
    %v926 = vpack.c.b16 %v701, %v676
    %v927 = vpack.c.b16 %v702, %v677
    %v928 = vpack.c.b16 %v703, %v678
    %v929 = vpack.c.b16 %v704, %v679
    %v930 = vpack.c.b16 %v705, %v680
    %v931 = vpack.c.b16 %v706, %v681
    %v932 = vpack.c.b16 %v707, %v682
    %v933 = vpack.c.b16 %v708, %v683
    %v934 = vpack.c.b16 %v709, %v684
    %v935 = vpack.c.b16 %v710, %v685
    %v936 = vpack.c.b16 %v711, %v686
    %v937 = vpack.c.b16 %v712, %v687
    %v938 = vpack.c.b16 %v713, %v688
    %v939 = vpack.c.b16 %v714, %v689
    %v940 = vpack.c.b16 %v715, %v690
    %v941 = vpack.c.b16 %v716, %v691
    %v942 = vpack.c.b16 %v717, %v692
    %v943 = vpack.c.b16 %v718, %v693
    %v944 = vpack.c.b16 %v719, %v694
    %v945 = vpack.c.b16 %v720, %v695
    %v946 = vpack.c.b16 %v721, %v696
    %v947 = vpack.c.b16 %v722, %v697
    %v948 = vpack.c.b16 %v723, %v698
    %v949 = vpack.c.b16 %v724, %v699
    %v950 = vpack.c.b16 %v750, %v725
    %v951 = vpack.c.b16 %v751, %v726
    %v952 = vpack.c.b16 %v752, %v727
    %v953 = vpack.c.b16 %v753, %v728
    %v954 = vpack.c.b16 %v754, %v729
    %v955 = vpack.c.b16 %v755, %v730
    %v956 = vpack.c.b16 %v756, %v731
    %v957 = vpack.c.b16 %v757, %v732
    %v958 = vpack.c.b16 %v758, %v733
    %v959 = vpack.c.b16 %v759, %v734
    %v960 = vpack.c.b16 %v760, %v735
    %v961 = vpack.c.b16 %v761, %v736
    %v962 = vpack.c.b16 %v762, %v737
    %v963 = vpack.c.b16 %v763, %v738
    %v964 = vpack.c.b16 %v764, %v739
    %v965 = vpack.c.b16 %v765, %v740
    %v966 = vpack.c.b16 %v766, %v741
    %v967 = vpack.c.b16 %v767, %v742
    %v968 = vpack.c.b16 %v768, %v743
    %v969 = vpack.c.b16 %v769, %v744
    %v970 = vpack.c.b16 %v770, %v745
    %v971 = vpack.c.b16 %v771, %v746
    %v972 = vpack.c.b16 %v772, %v747
    %v973 = vpack.c.b16 %v773, %v748
    %v974 = vpack.c.b16 %v774, %v749
    %v975 = vpack.c.b16 %v800, %v775
    %v976 = vpack.c.b16 %v801, %v776
    %v977 = vpack.c.b16 %v802, %v777
    %v978 = vpack.c.b16 %v803, %v778
    %v979 = vpack.c.b16 %v804, %v779
    %v980 = vpack.c.b16 %v805, %v780
    %v981 = vpack.c.b16 %v806, %v781
    %v982 = vpack.c.b16 %v807, %v782
    %v983 = vpack.c.b16 %v808, %v783
    %v984 = vpack.c.b16 %v809, %v784
    %v985 = vpack.c.b16 %v810, %v785
    %v986 = vpack.c.b16 %v811, %v786
    %v987 = vpack.c.b16 %v812, %v787
    %v988 = vpack.c.b16 %v813, %v788
    %v989 = vpack.c.b16 %v814, %v789
    %v990 = vpack.c.b16 %v815, %v790
    %v991 = vpack.c.b16 %v816, %v791
    %v992 = vpack.c.b16 %v817, %v792
    %v993 = vpack.c.b16 %v818, %v793
    %v994 = vpack.c.b16 %v819, %v794
    %v995 = vpack.c.b16 %v820, %v795
    %v996 = vpack.c.b16 %v821, %v796
    %v997 = vpack.c.b16 %v822, %v797
    %v998 = vpack.c.b16 %v823, %v798
    %v999 = vpack.c.b16 %v824, %v799
    %v1000 = vpack.c.b16 %v825, %v825
    %v1001 = vpack.c.b16 %v826, %v826
    %v1002 = vpack.c.b16 %v827, %v827
    %v1003 = vpack.c.b16 %v828, %v828
    %v1004 = vpack.c.b16 %v829, %v829
    %v1005 = vpack.c.b16 %v830, %v830
    %v1006 = vpack.c.b16 %v831, %v831
    %v1007 = vpack.c.b16 %v832, %v832
    %v1008 = vpack.c.b16 %v833, %v833
    %v1009 = vpack.c.b16 %v834, %v834
    %v1010 = vpack.c.b16 %v835, %v835
    %v1011 = vpack.c.b16 %v836, %v836
    %v1012 = vpack.c.b16 %v837, %v837
    %v1013 = vpack.c.b16 %v838, %v838
    %v1014 = vpack.c.b16 %v839, %v839
    %v1015 = vpack.c.b16 %v840, %v840
    %v1016 = vpack.c.b16 %v841, %v841
    %v1017 = vpack.c.b16 %v842, %v842
    %v1018 = vpack.c.b16 %v843, %v843
    %v1019 = vpack.c.b16 %v844, %v844
    %v1020 = vpack.c.b16 %v845, %v845
    %v1021 = vpack.c.b16 %v846, %v846
    %v1022 = vpack.c.b16 %v847, %v847
    %v1023 = vpack.c.b16 %v848, %v848
    %v1024 = vpack.c.b16 %v849, %v849
    %vm1175 = vcmask 818176
    %v1177 = vsel %vm1175, %v53, 0
    %vm1179 = vcmask 1041408
    %v1181 = vsel %vm1179, %v1000, 0
    %v1184 = vsel %vm1179, %v1001, 0
    %v1187 = vsel %vm1179, %v1002, 0
    %v1190 = vsel %vm1179, %v1003, 0
    %v1193 = vsel %vm1179, %v1004, 0
    %v1196 = vsel %vm1179, %v1005, 0
    %v1199 = vsel %vm1179, %v1006, 0
    %v1202 = vsel %vm1179, %v1007, 0
    %v1205 = vsel %vm1179, %v1008, 0
    %v1208 = vsel %vm1179, %v1009, 0
    %v1211 = vsel %vm1179, %v1010, 0
    %v1214 = vsel %vm1179, %v1011, 0
    %v1217 = vsel %vm1179, %v1012, 0
    %v1220 = vsel %vm1179, %v1013, 0
    %v1223 = vsel %vm1179, %v1014, 0
    %v1226 = vsel %vm1179, %v1015, 0
    %v1229 = vsel %vm1179, %v1016, 0
    %v1232 = vsel %vm1179, %v1017, 0
    %v1235 = vsel %vm1179, %v1018, 0
    %v1238 = vsel %vm1179, %v1019, 0
    %v1241 = vsel %vm1179, %v1020, 0
    %v1244 = vsel %vm1179, %v1021, 0
    %v1247 = vsel %vm1179, %v1022, 0
    %v1250 = vsel %vm1179, %v1023, 0
    %v1253 = vsel %vm1179, %v1024, 0
    %1255 = vmatprep.subr.bf16.mxu0 %v851
    %1256 = vmatpush1.bf16.msra.mxu0 %v850
    %1257 = vmatprep.subr.bf16.mxu0 %v876
    %1258 = vmatpush1.bf16.msra.mxu0 %v875
    %1259 = vmatprep.subr.bf16.mxu0 %v901
    %1260 = vmatpush1.bf16.msra.mxu0 %v900
    %1261 = vmatprep.subr.bf16.mxu0 %v926
    %1262 = vmatpush1.bf16.msra.mxu0 %v925
    %1263 = vmatprep.subr.bf16.mxu0 %v951
    %1264 = vmatpush1.bf16.msra.mxu0 %v950
    %1265 = vmatprep.subr.bf16.mxu0 %v976
    %1266 = vmatpush1.bf16.msra.mxu0 %v975
    %1267 = vmatprep.subr.bf16.mxu0 %v1184
    %1268 = vmatpush1.bf16.msra.mxu0 %v1181
    %1269 = vmatprep.subr.bf16.mxu0 0
    %1270 = vmatpush1.bf16.msra.mxu0 0
    %1271 = vmatprep.subr.bf16.mxu0 0
    %1272 = vmatpush1.bf16.msra.mxu0 0
    %1273 = vmatprep.subr.bf16.mxu0 0
    %1274 = vmatpush1.bf16.msra.mxu0 0
    %1275 = vmatprep.subr.bf16.mxu0 0
    %1276 = vmatpush1.bf16.msra.mxu0 0
    %1277 = vmatprep.subr.bf16.mxu0 0
    %1278 = vmatpush1.bf16.msra.mxu0 0
    %1279 = vmatprep.subr.bf16.mxu0 0
    %1280 = vmatpush1.bf16.msra.mxu0 0
    %1281 = vmatprep.subr.bf16.mxu0 0
    %1282 = vmatpush1.bf16.msra.mxu0 0
    %1283 = vmatprep.subr.bf16.mxu0 0
    %1284 = vmatpush1.bf16.msra.mxu0 0
    %1285 = vmatprep.subr.bf16.mxu0 0
    %1286 = vmatpush1.bf16.msra.mxu0 0
    %1287 = vmatprep.mubr.bf16.mxu0 0
    %1288 = vmatmul.mubr.bf16.gmra.mrb[0].mxu0 %v1177
    %v1289 = vpop.f32.mrb[0].mxu0
    %v1290 = vadd.f32 %v234, %v1289
    %v1291 = vpop.f32.mrb[0].mxu0
    %v1292 = vadd.f32 %v238, %v1291
    %v1293 = vpop.f32.mrb[0].mxu0
    %v1294 = vpop.f32.mrb[0].mxu0
    %1295 = vdwg.mxu0
    %1296 = vmatprep.subr.bf16.mxu0 %v853
    %1297 = vmatpush1.bf16.msra.mxu0 %v852
    %1298 = vmatprep.subr.bf16.mxu0 %v878
    %1299 = vmatpush1.bf16.msra.mxu0 %v877
    %1300 = vmatprep.subr.bf16.mxu0 %v903
    %1301 = vmatpush1.bf16.msra.mxu0 %v902
    %1302 = vmatprep.subr.bf16.mxu0 %v928
    %1303 = vmatpush1.bf16.msra.mxu0 %v927
    %1304 = vmatprep.subr.bf16.mxu0 %v953
    %1305 = vmatpush1.bf16.msra.mxu0 %v952
    %1306 = vmatprep.subr.bf16.mxu0 %v978
    %1307 = vmatpush1.bf16.msra.mxu0 %v977
    %1308 = vmatprep.subr.bf16.mxu0 %v1190
    %1309 = vmatpush1.bf16.msra.mxu0 %v1187
    %1310 = vmatprep.subr.bf16.mxu0 0
    %1311 = vmatpush1.bf16.msra.mxu0 0
    %1312 = vmatprep.subr.bf16.mxu0 0
    %1313 = vmatpush1.bf16.msra.mxu0 0
    %1314 = vmatprep.subr.bf16.mxu0 0
    %1315 = vmatpush1.bf16.msra.mxu0 0
    %1316 = vmatprep.subr.bf16.mxu0 0
    %1317 = vmatpush1.bf16.msra.mxu0 0
    %1318 = vmatprep.subr.bf16.mxu0 0
    %1319 = vmatpush1.bf16.msra.mxu0 0
    %1320 = vmatprep.subr.bf16.mxu0 0
    %1321 = vmatpush1.bf16.msra.mxu0 0
    %1322 = vmatprep.subr.bf16.mxu0 0
    %1323 = vmatpush1.bf16.msra.mxu0 0
    %1324 = vmatprep.subr.bf16.mxu0 0
    %1325 = vmatpush1.bf16.msra.mxu0 0
    %1326 = vmatprep.subr.bf16.mxu0 0
    %1327 = vmatpush1.bf16.msra.mxu0 0
    %1328 = vmatprep.mubr.bf16.mxu0 0
    %1329 = vmatmul.mubr.bf16.gmra.mrb[0].mxu0 %v1177
    %v1330 = vpop.f32.mrb[0].mxu0
    %v1331 = vadd.f32 %v242, %v1330
    %v1332 = vpop.f32.mrb[0].mxu0
    %v1333 = vadd.f32 %v246, %v1332
    %v1334 = vpop.f32.mrb[0].mxu0
    %v1335 = vpop.f32.mrb[0].mxu0
    %1336 = vdwg.mxu0
    %1337 = vmatprep.subr.bf16.mxu0 %v855
    %1338 = vmatpush1.bf16.msra.mxu0 %v854
    %1339 = vmatprep.subr.bf16.mxu0 %v880
    %1340 = vmatpush1.bf16.msra.mxu0 %v879
    %1341 = vmatprep.subr.bf16.mxu0 %v905
    %1342 = vmatpush1.bf16.msra.mxu0 %v904
    %1343 = vmatprep.subr.bf16.mxu0 %v930
    %1344 = vmatpush1.bf16.msra.mxu0 %v929
    %1345 = vmatprep.subr.bf16.mxu0 %v955
    %1346 = vmatpush1.bf16.msra.mxu0 %v954
    %1347 = vmatprep.subr.bf16.mxu0 %v980
    %1348 = vmatpush1.bf16.msra.mxu0 %v979
    %1349 = vmatprep.subr.bf16.mxu0 %v1196
    %1350 = vmatpush1.bf16.msra.mxu0 %v1193
    %1351 = vmatprep.subr.bf16.mxu0 0
    %1352 = vmatpush1.bf16.msra.mxu0 0
    %1353 = vmatprep.subr.bf16.mxu0 0
    %1354 = vmatpush1.bf16.msra.mxu0 0
    %1355 = vmatprep.subr.bf16.mxu0 0
    %1356 = vmatpush1.bf16.msra.mxu0 0
    %1357 = vmatprep.subr.bf16.mxu0 0
    %1358 = vmatpush1.bf16.msra.mxu0 0
    %1359 = vmatprep.subr.bf16.mxu0 0
    %1360 = vmatpush1.bf16.msra.mxu0 0
    %1361 = vmatprep.subr.bf16.mxu0 0
    %1362 = vmatpush1.bf16.msra.mxu0 0
    %1363 = vmatprep.subr.bf16.mxu0 0
    %1364 = vmatpush1.bf16.msra.mxu0 0
    %1365 = vmatprep.subr.bf16.mxu0 0
    %1366 = vmatpush1.bf16.msra.mxu0 0
    %1367 = vmatprep.subr.bf16.mxu0 0
    %1368 = vmatpush1.bf16.msra.mxu0 0
    %1369 = vmatprep.mubr.bf16.mxu0 0
    %1370 = vmatmul.mubr.bf16.gmra.mrb[0].mxu0 %v1177
    %v1371 = vpop.f32.mrb[0].mxu0
    %v1372 = vadd.f32 %v250, %v1371
    %v1373 = vpop.f32.mrb[0].mxu0
    %v1374 = vadd.f32 %v254, %v1373
    %v1375 = vpop.f32.mrb[0].mxu0
    %v1376 = vpop.f32.mrb[0].mxu0
    %1377 = vdwg.mxu0
    %1378 = vmatprep.subr.bf16.mxu0 %v857
    %1379 = vmatpush1.bf16.msra.mxu0 %v856
    %1380 = vmatprep.subr.bf16.mxu0 %v882
    %1381 = vmatpush1.bf16.msra.mxu0 %v881
    %1382 = vmatprep.subr.bf16.mxu0 %v907
    %1383 = vmatpush1.bf16.msra.mxu0 %v906
    %1384 = vmatprep.subr.bf16.mxu0 %v932
    %1385 = vmatpush1.bf16.msra.mxu0 %v931
    %1386 = vmatprep.subr.bf16.mxu0 %v957
    %1387 = vmatpush1.bf16.msra.mxu0 %v956
    %1388 = vmatprep.subr.bf16.mxu0 %v982
    %1389 = vmatpush1.bf16.msra.mxu0 %v981
    %1390 = vmatprep.subr.bf16.mxu0 %v1202
    %1391 = vmatpush1.bf16.msra.mxu0 %v1199
    %1392 = vmatprep.subr.bf16.mxu0 0
    %1393 = vmatpush1.bf16.msra.mxu0 0
    %1394 = vmatprep.subr.bf16.mxu0 0
    %1395 = vmatpush1.bf16.msra.mxu0 0
    %1396 = vmatprep.subr.bf16.mxu0 0
    %1397 = vmatpush1.bf16.msra.mxu0 0
    %1398 = vmatprep.subr.bf16.mxu0 0
    %1399 = vmatpush1.bf16.msra.mxu0 0
    %1400 = vmatprep.subr.bf16.mxu0 0
    %1401 = vmatpush1.bf16.msra.mxu0 0
    %1402 = vmatprep.subr.bf16.mxu0 0
    %1403 = vmatpush1.bf16.msra.mxu0 0
    %1404 = vmatprep.subr.bf16.mxu0 0
    %1405 = vmatpush1.bf16.msra.mxu0 0
    %1406 = vmatprep.subr.bf16.mxu0 0
    %1407 = vmatpush1.bf16.msra.mxu0 0
    %1408 = vmatprep.subr.bf16.mxu0 0
    %1409 = vmatpush1.bf16.msra.mxu0 0
    %1410 = vmatprep.mubr.bf16.mxu0 0
    %1411 = vmatmul.mubr.bf16.gmra.mrb[0].mxu0 %v1177
    %v1412 = vpop.f32.mrb[0].mxu0
    %v1413 = vadd.f32 %v258, %v1412
    %v1414 = vpop.f32.mrb[0].mxu0
    %v1415 = vadd.f32 %v262, %v1414
    %v1416 = vpop.f32.mrb[0].mxu0
    %v1417 = vpop.f32.mrb[0].mxu0
    %1418 = vdwg.mxu0
    %1419 = vmatprep.subr.bf16.mxu0 %v859
    %1420 = vmatpush1.bf16.msra.mxu0 %v858
    %1421 = vmatprep.subr.bf16.mxu0 %v884
    %1422 = vmatpush1.bf16.msra.mxu0 %v883
    %1423 = vmatprep.subr.bf16.mxu0 %v909
    %1424 = vmatpush1.bf16.msra.mxu0 %v908
    %1425 = vmatprep.subr.bf16.mxu0 %v934
    %1426 = vmatpush1.bf16.msra.mxu0 %v933
    %1427 = vmatprep.subr.bf16.mxu0 %v959
    %1428 = vmatpush1.bf16.msra.mxu0 %v958
    %1429 = vmatprep.subr.bf16.mxu0 %v984
    %1430 = vmatpush1.bf16.msra.mxu0 %v983
    %1431 = vmatprep.subr.bf16.mxu0 %v1208
    %1432 = vmatpush1.bf16.msra.mxu0 %v1205
    %1433 = vmatprep.subr.bf16.mxu0 0
    %1434 = vmatpush1.bf16.msra.mxu0 0
    %1435 = vmatprep.subr.bf16.mxu0 0
    %1436 = vmatpush1.bf16.msra.mxu0 0
    %1437 = vmatprep.subr.bf16.mxu0 0
    %1438 = vmatpush1.bf16.msra.mxu0 0
    %1439 = vmatprep.subr.bf16.mxu0 0
    %1440 = vmatpush1.bf16.msra.mxu0 0
    %1441 = vmatprep.subr.bf16.mxu0 0
    %1442 = vmatpush1.bf16.msra.mxu0 0
    %1443 = vmatprep.subr.bf16.mxu0 0
    %1444 = vmatpush1.bf16.msra.mxu0 0
    %1445 = vmatprep.subr.bf16.mxu0 0
    %1446 = vmatpush1.bf16.msra.mxu0 0
    %1447 = vmatprep.subr.bf16.mxu0 0
    %1448 = vmatpush1.bf16.msra.mxu0 0
    %1449 = vmatprep.subr.bf16.mxu0 0
    %1450 = vmatpush1.bf16.msra.mxu0 0
    %1451 = vmatprep.mubr.bf16.mxu0 0
    %1452 = vmatmul.mubr.bf16.gmra.mrb[0].mxu0 %v1177
    %v1453 = vpop.f32.mrb[0].mxu0
    %v1454 = vadd.f32 %v266, %v1453
    %v1455 = vpop.f32.mrb[0].mxu0
    %v1456 = vadd.f32 %v270, %v1455
    %v1457 = vpop.f32.mrb[0].mxu0
    %v1458 = vpop.f32.mrb[0].mxu0
    %1459 = vdwg.mxu0
    %1460 = vmatprep.subr.bf16.mxu0 %v861
    %1461 = vmatpush1.bf16.msra.mxu0 %v860
    %1462 = vmatprep.subr.bf16.mxu0 %v886
    %1463 = vmatpush1.bf16.msra.mxu0 %v885
    %1464 = vmatprep.subr.bf16.mxu0 %v911
    %1465 = vmatpush1.bf16.msra.mxu0 %v910
    %1466 = vmatprep.subr.bf16.mxu0 %v936
    %1467 = vmatpush1.bf16.msra.mxu0 %v935
    %1468 = vmatprep.subr.bf16.mxu0 %v961
    %1469 = vmatpush1.bf16.msra.mxu0 %v960
    %1470 = vmatprep.subr.bf16.mxu0 %v986
    %1471 = vmatpush1.bf16.msra.mxu0 %v985
    %1472 = vmatprep.subr.bf16.mxu0 %v1214
    %1473 = vmatpush1.bf16.msra.mxu0 %v1211
    %1474 = vmatprep.subr.bf16.mxu0 0
    %1475 = vmatpush1.bf16.msra.mxu0 0
    %1476 = vmatprep.subr.bf16.mxu0 0
    %1477 = vmatpush1.bf16.msra.mxu0 0
    %1478 = vmatprep.subr.bf16.mxu0 0
    %1479 = vmatpush1.bf16.msra.mxu0 0
    %1480 = vmatprep.subr.bf16.mxu0 0
    %1481 = vmatpush1.bf16.msra.mxu0 0
    %1482 = vmatprep.subr.bf16.mxu0 0
    %1483 = vmatpush1.bf16.msra.mxu0 0
    %1484 = vmatprep.subr.bf16.mxu0 0
    %1485 = vmatpush1.bf16.msra.mxu0 0
    %1486 = vmatprep.subr.bf16.mxu0 0
    %1487 = vmatpush1.bf16.msra.mxu0 0
    %1488 = vmatprep.subr.bf16.mxu0 0
    %1489 = vmatpush1.bf16.msra.mxu0 0
    %1490 = vmatprep.subr.bf16.mxu0 0
    %1491 = vmatpush1.bf16.msra.mxu0 0
    %1492 = vmatprep.mubr.bf16.mxu0 0
    %1493 = vmatmul.mubr.bf16.gmra.mrb[0].mxu0 %v1177
    %v1494 = vpop.f32.mrb[0].mxu0
    %v1495 = vadd.f32 %v274, %v1494
    %v1496 = vpop.f32.mrb[0].mxu0
    %v1497 = vadd.f32 %v278, %v1496
    %v1498 = vpop.f32.mrb[0].mxu0
    %v1499 = vpop.f32.mrb[0].mxu0
    %1500 = vdwg.mxu0
    %1501 = vmatprep.subr.bf16.mxu0 %v863
    %1502 = vmatpush1.bf16.msra.mxu0 %v862
    %1503 = vmatprep.subr.bf16.mxu0 %v888
    %1504 = vmatpush1.bf16.msra.mxu0 %v887
    %1505 = vmatprep.subr.bf16.mxu0 %v913
    %1506 = vmatpush1.bf16.msra.mxu0 %v912
    %1507 = vmatprep.subr.bf16.mxu0 %v938
    %1508 = vmatpush1.bf16.msra.mxu0 %v937
    %1509 = vmatprep.subr.bf16.mxu0 %v963
    %1510 = vmatpush1.bf16.msra.mxu0 %v962
    %1511 = vmatprep.subr.bf16.mxu0 %v988
    %1512 = vmatpush1.bf16.msra.mxu0 %v987
    %1513 = vmatprep.subr.bf16.mxu0 %v1220
    %1514 = vmatpush1.bf16.msra.mxu0 %v1217
    %1515 = vmatprep.subr.bf16.mxu0 0
    %1516 = vmatpush1.bf16.msra.mxu0 0
    %1517 = vmatprep.subr.bf16.mxu0 0
    %1518 = vmatpush1.bf16.msra.mxu0 0
    %1519 = vmatprep.subr.bf16.mxu0 0
    %1520 = vmatpush1.bf16.msra.mxu0 0
    %1521 = vmatprep.subr.bf16.mxu0 0
    %1522 = vmatpush1.bf16.msra.mxu0 0
    %1523 = vmatprep.subr.bf16.mxu0 0
    %1524 = vmatpush1.bf16.msra.mxu0 0
    %1525 = vmatprep.subr.bf16.mxu0 0
    %1526 = vmatpush1.bf16.msra.mxu0 0
    %1527 = vmatprep.subr.bf16.mxu0 0
    %1528 = vmatpush1.bf16.msra.mxu0 0
    %1529 = vmatprep.subr.bf16.mxu0 0
    %1530 = vmatpush1.bf16.msra.mxu0 0
    %1531 = vmatprep.subr.bf16.mxu0 0
    %1532 = vmatpush1.bf16.msra.mxu0 0
    %1533 = vmatprep.mubr.bf16.mxu0 0
    %1534 = vmatmul.mubr.bf16.gmra.mrb[0].mxu0 %v1177
    %v1535 = vpop.f32.mrb[0].mxu0
    %v1536 = vadd.f32 %v282, %v1535
    %v1537 = vpop.f32.mrb[0].mxu0
    %v1538 = vadd.f32 %v286, %v1537
    %v1539 = vpop.f32.mrb[0].mxu0
    %v1540 = vpop.f32.mrb[0].mxu0
    %1541 = vdwg.mxu0
    %1542 = vmatprep.subr.bf16.mxu0 %v865
    %1543 = vmatpush1.bf16.msra.mxu0 %v864
    %1544 = vmatprep.subr.bf16.mxu0 %v890
    %1545 = vmatpush1.bf16.msra.mxu0 %v889
    %1546 = vmatprep.subr.bf16.mxu0 %v915
    %1547 = vmatpush1.bf16.msra.mxu0 %v914
    %1548 = vmatprep.subr.bf16.mxu0 %v940
    %1549 = vmatpush1.bf16.msra.mxu0 %v939
    %1550 = vmatprep.subr.bf16.mxu0 %v965
    %1551 = vmatpush1.bf16.msra.mxu0 %v964
    %1552 = vmatprep.subr.bf16.mxu0 %v990
    %1553 = vmatpush1.bf16.msra.mxu0 %v989
    %1554 = vmatprep.subr.bf16.mxu0 %v1226
    %1555 = vmatpush1.bf16.msra.mxu0 %v1223
    %1556 = vmatprep.subr.bf16.mxu0 0
    %1557 = vmatpush1.bf16.msra.mxu0 0
    %1558 = vmatprep.subr.bf16.mxu0 0
    %1559 = vmatpush1.bf16.msra.mxu0 0
    %1560 = vmatprep.subr.bf16.mxu0 0
    %1561 = vmatpush1.bf16.msra.mxu0 0
    %1562 = vmatprep.subr.bf16.mxu0 0
    %1563 = vmatpush1.bf16.msra.mxu0 0
    %1564 = vmatprep.subr.bf16.mxu0 0
    %1565 = vmatpush1.bf16.msra.mxu0 0
    %1566 = vmatprep.subr.bf16.mxu0 0
    %1567 = vmatpush1.bf16.msra.mxu0 0
    %1568 = vmatprep.subr.bf16.mxu0 0
    %1569 = vmatpush1.bf16.msra.mxu0 0
    %1570 = vmatprep.subr.bf16.mxu0 0
    %1571 = vmatpush1.bf16.msra.mxu0 0
    %1572 = vmatprep.subr.bf16.mxu0 0
    %1573 = vmatpush1.bf16.msra.mxu0 0
    %1574 = vmatprep.mubr.bf16.mxu0 0
    %1575 = vmatmul.mubr.bf16.gmra.mrb[0].mxu0 %v1177
    %v1576 = vpop.f32.mrb[0].mxu0
    %v1577 = vadd.f32 %v290, %v1576
    %v1578 = vpop.f32.mrb[0].mxu0
    %v1579 = vadd.f32 %v294, %v1578
    %v1580 = vpop.f32.mrb[0].mxu0
    %v1581 = vpop.f32.mrb[0].mxu0
    %1582 = vdwg.mxu0
    %1583 = vmatprep.subr.bf16.mxu0 %v867
    %1584 = vmatpush1.bf16.msra.mxu0 %v866
    %1585 = vmatprep.subr.bf16.mxu0 %v892
    %1586 = vmatpush1.bf16.msra.mxu0 %v891
    %1587 = vmatprep.subr.bf16.mxu0 %v917
    %1588 = vmatpush1.bf16.msra.mxu0 %v916
    %1589 = vmatprep.subr.bf16.mxu0 %v942
    %1590 = vmatpush1.bf16.msra.mxu0 %v941
    %1591 = vmatprep.subr.bf16.mxu0 %v967
    %1592 = vmatpush1.bf16.msra.mxu0 %v966
    %1593 = vmatprep.subr.bf16.mxu0 %v992
    %1594 = vmatpush1.bf16.msra.mxu0 %v991
    %1595 = vmatprep.subr.bf16.mxu0 %v1232
    %1596 = vmatpush1.bf16.msra.mxu0 %v1229
    %1597 = vmatprep.subr.bf16.mxu0 0
    %1598 = vmatpush1.bf16.msra.mxu0 0
    %1599 = vmatprep.subr.bf16.mxu0 0
    %1600 = vmatpush1.bf16.msra.mxu0 0
    %1601 = vmatprep.subr.bf16.mxu0 0
    %1602 = vmatpush1.bf16.msra.mxu0 0
    %1603 = vmatprep.subr.bf16.mxu0 0
    %1604 = vmatpush1.bf16.msra.mxu0 0
    %1605 = vmatprep.subr.bf16.mxu0 0
    %1606 = vmatpush1.bf16.msra.mxu0 0
    %1607 = vmatprep.subr.bf16.mxu0 0
    %1608 = vmatpush1.bf16.msra.mxu0 0
    %1609 = vmatprep.subr.bf16.mxu0 0
    %1610 = vmatpush1.bf16.msra.mxu0 0
    %1611 = vmatprep.subr.bf16.mxu0 0
    %1612 = vmatpush1.bf16.msra.mxu0 0
    %1613 = vmatprep.subr.bf16.mxu0 0
    %1614 = vmatpush1.bf16.msra.mxu0 0
    %1615 = vmatprep.mubr.bf16.mxu0 0
    %1616 = vmatmul.mubr.bf16.gmra.mrb[0].mxu0 %v1177
    %v1617 = vpop.f32.mrb[0].mxu0
    %v1618 = vadd.f32 %v298, %v1617
    %v1619 = vpop.f32.mrb[0].mxu0
    %v1620 = vadd.f32 %v302, %v1619
    %v1621 = vpop.f32.mrb[0].mxu0
    %v1622 = vpop.f32.mrb[0].mxu0
    %1623 = vdwg.mxu0
    %1624 = vmatprep.subr.bf16.mxu0 %v869
    %1625 = vmatpush1.bf16.msra.mxu0 %v868
    %1626 = vmatprep.subr.bf16.mxu0 %v894
    %1627 = vmatpush1.bf16.msra.mxu0 %v893
    %1628 = vmatprep.subr.bf16.mxu0 %v919
    %1629 = vmatpush1.bf16.msra.mxu0 %v918
    %1630 = vmatprep.subr.bf16.mxu0 %v944
    %1631 = vmatpush1.bf16.msra.mxu0 %v943
    %1632 = vmatprep.subr.bf16.mxu0 %v969
    %1633 = vmatpush1.bf16.msra.mxu0 %v968
    %1634 = vmatprep.subr.bf16.mxu0 %v994
    %1635 = vmatpush1.bf16.msra.mxu0 %v993
    %1636 = vmatprep.subr.bf16.mxu0 %v1238
    %1637 = vmatpush1.bf16.msra.mxu0 %v1235
    %1638 = vmatprep.subr.bf16.mxu0 0
    %1639 = vmatpush1.bf16.msra.mxu0 0
    %1640 = vmatprep.subr.bf16.mxu0 0
    %1641 = vmatpush1.bf16.msra.mxu0 0
    %1642 = vmatprep.subr.bf16.mxu0 0
    %1643 = vmatpush1.bf16.msra.mxu0 0
    %1644 = vmatprep.subr.bf16.mxu0 0
    %1645 = vmatpush1.bf16.msra.mxu0 0
    %1646 = vmatprep.subr.bf16.mxu0 0
    %1647 = vmatpush1.bf16.msra.mxu0 0
    %1648 = vmatprep.subr.bf16.mxu0 0
    %1649 = vmatpush1.bf16.msra.mxu0 0
    %1650 = vmatprep.subr.bf16.mxu0 0
    %1651 = vmatpush1.bf16.msra.mxu0 0
    %1652 = vmatprep.subr.bf16.mxu0 0
    %1653 = vmatpush1.bf16.msra.mxu0 0
    %1654 = vmatprep.subr.bf16.mxu0 0
    %1655 = vmatpush1.bf16.msra.mxu0 0
    %1656 = vmatprep.mubr.bf16.mxu0 0
    %1657 = vmatmul.mubr.bf16.gmra.mrb[0].mxu0 %v1177
    %v1658 = vpop.f32.mrb[0].mxu0
    %v1659 = vadd.f32 %v306, %v1658
    %v1660 = vpop.f32.mrb[0].mxu0
    %v1661 = vadd.f32 %v310, %v1660
    %v1662 = vpop.f32.mrb[0].mxu0
    %v1663 = vpop.f32.mrb[0].mxu0
    %1664 = vdwg.mxu0
    %1665 = vmatprep.subr.bf16.mxu0 %v871
    %1666 = vmatpush1.bf16.msra.mxu0 %v870
    %1667 = vmatprep.subr.bf16.mxu0 %v896
    %1668 = vmatpush1.bf16.msra.mxu0 %v895
    %1669 = vmatprep.subr.bf16.mxu0 %v921
    %1670 = vmatpush1.bf16.msra.mxu0 %v920
    %1671 = vmatprep.subr.bf16.mxu0 %v946
    %1672 = vmatpush1.bf16.msra.mxu0 %v945
    %1673 = vmatprep.subr.bf16.mxu0 %v971
    %1674 = vmatpush1.bf16.msra.mxu0 %v970
    %1675 = vmatprep.subr.bf16.mxu0 %v996
    %1676 = vmatpush1.bf16.msra.mxu0 %v995
    %1677 = vmatprep.subr.bf16.mxu0 %v1244
    %1678 = vmatpush1.bf16.msra.mxu0 %v1241
    %1679 = vmatprep.subr.bf16.mxu0 0
    %1680 = vmatpush1.bf16.msra.mxu0 0
    %1681 = vmatprep.subr.bf16.mxu0 0
    %1682 = vmatpush1.bf16.msra.mxu0 0
    %1683 = vmatprep.subr.bf16.mxu0 0
    %1684 = vmatpush1.bf16.msra.mxu0 0
    %1685 = vmatprep.subr.bf16.mxu0 0
    %1686 = vmatpush1.bf16.msra.mxu0 0
    %1687 = vmatprep.subr.bf16.mxu0 0
    %1688 = vmatpush1.bf16.msra.mxu0 0
    %1689 = vmatprep.subr.bf16.mxu0 0
    %1690 = vmatpush1.bf16.msra.mxu0 0
    %1691 = vmatprep.subr.bf16.mxu0 0
    %1692 = vmatpush1.bf16.msra.mxu0 0
    %1693 = vmatprep.subr.bf16.mxu0 0
    %1694 = vmatpush1.bf16.msra.mxu0 0
    %1695 = vmatprep.subr.bf16.mxu0 0
    %1696 = vmatpush1.bf16.msra.mxu0 0
    %1697 = vmatprep.mubr.bf16.mxu0 0
    %1698 = vmatmul.mubr.bf16.gmra.mrb[0].mxu0 %v1177
    %v1699 = vpop.f32.mrb[0].mxu0
    %v1700 = vadd.f32 %v314, %v1699
    %v1701 = vpop.f32.mrb[0].mxu0
    %v1702 = vadd.f32 %v318, %v1701
    %v1703 = vpop.f32.mrb[0].mxu0
    %v1704 = vpop.f32.mrb[0].mxu0
    %1705 = vdwg.mxu0
    %1706 = vmatprep.subr.bf16.mxu0 %v873
    %1707 = vmatpush1.bf16.msra.mxu0 %v872
    %1708 = vmatprep.subr.bf16.mxu0 %v898
    %1709 = vmatpush1.bf16.msra.mxu0 %v897
    %1710 = vmatprep.subr.bf16.mxu0 %v923
    %1711 = vmatpush1.bf16.msra.mxu0 %v922
    %1712 = vmatprep.subr.bf16.mxu0 %v948
    %1713 = vmatpush1.bf16.msra.mxu0 %v947
    %1714 = vmatprep.subr.bf16.mxu0 %v973
    %1715 = vmatpush1.bf16.msra.mxu0 %v972
    %1716 = vmatprep.subr.bf16.mxu0 %v998
    %1717 = vmatpush1.bf16.msra.mxu0 %v997
    %1718 = vmatprep.subr.bf16.mxu0 %v1250
    %1719 = vmatpush1.bf16.msra.mxu0 %v1247
    %1720 = vmatprep.subr.bf16.mxu0 0
    %1721 = vmatpush1.bf16.msra.mxu0 0
    %1722 = vmatprep.subr.bf16.mxu0 0
    %1723 = vmatpush1.bf16.msra.mxu0 0
    %1724 = vmatprep.subr.bf16.mxu0 0
    %1725 = vmatpush1.bf16.msra.mxu0 0
    %1726 = vmatprep.subr.bf16.mxu0 0
    %1727 = vmatpush1.bf16.msra.mxu0 0
    %1728 = vmatprep.subr.bf16.mxu0 0
    %1729 = vmatpush1.bf16.msra.mxu0 0
    %1730 = vmatprep.subr.bf16.mxu0 0
    %1731 = vmatpush1.bf16.msra.mxu0 0
    %1732 = vmatprep.subr.bf16.mxu0 0
    %1733 = vmatpush1.bf16.msra.mxu0 0
    %1734 = vmatprep.subr.bf16.mxu0 0
    %1735 = vmatpush1.bf16.msra.mxu0 0
    %1736 = vmatprep.subr.bf16.mxu0 0
    %1737 = vmatpush1.bf16.msra.mxu0 0
    %1738 = vmatprep.mubr.bf16.mxu0 0
    %1739 = vmatmul.mubr.bf16.gmra.mrb[0].mxu0 %v1177
    %v1740 = vpop.f32.mrb[0].mxu0
    %v1741 = vadd.f32 %v322, %v1740
    %v1742 = vpop.f32.mrb[0].mxu0
    %v1743 = vadd.f32 %v326, %v1742
    %v1744 = vpop.f32.mrb[0].mxu0
    %v1745 = vpop.f32.mrb[0].mxu0
    %1746 = vdwg.mxu0
    %1747 = vmatprep.subr.bf16.mxu0 0
    %1748 = vmatpush1.bf16.msra.mxu0 %v874
    %1749 = vmatprep.subr.bf16.mxu0 0
    %1750 = vmatpush1.bf16.msra.mxu0 %v899
    %1751 = vmatprep.subr.bf16.mxu0 0
    %1752 = vmatpush1.bf16.msra.mxu0 %v924
    %1753 = vmatprep.subr.bf16.mxu0 0
    %1754 = vmatpush1.bf16.msra.mxu0 %v949
    %1755 = vmatprep.subr.bf16.mxu0 0
    %1756 = vmatpush1.bf16.msra.mxu0 %v974
    %1757 = vmatprep.subr.bf16.mxu0 0
    %1758 = vmatpush1.bf16.msra.mxu0 %v999
    %1759 = vmatprep.subr.bf16.mxu0 0
    %1760 = vmatpush1.bf16.msra.mxu0 %v1253
    %1761 = vmatprep.subr.bf16.mxu0 0
    %1762 = vmatpush1.bf16.msra.mxu0 0
    %1763 = vmatprep.subr.bf16.mxu0 0
    %1764 = vmatpush1.bf16.msra.mxu0 0
    %1765 = vmatprep.subr.bf16.mxu0 0
    %1766 = vmatpush1.bf16.msra.mxu0 0
    %1767 = vmatprep.subr.bf16.mxu0 0
    %1768 = vmatpush1.bf16.msra.mxu0 0
    %1769 = vmatprep.subr.bf16.mxu0 0
    %1770 = vmatpush1.bf16.msra.mxu0 0
    %1771 = vmatprep.subr.bf16.mxu0 0
    %1772 = vmatpush1.bf16.msra.mxu0 0
    %1773 = vmatprep.subr.bf16.mxu0 0
    %1774 = vmatpush1.bf16.msra.mxu0 0
    %1775 = vmatprep.subr.bf16.mxu0 0
    %1776 = vmatpush1.bf16.msra.mxu0 0
    %1777 = vmatprep.subr.bf16.mxu0 0
    %1778 = vmatpush1.bf16.msra.mxu0 0
    %1779 = vmatprep.mubr.bf16.mxu0 0
    %1780 = vmatmul.mubr.bf16.gmra.mrb[0].mxu0 %v1177
    %v1781 = vpop.f32.mrb[0].mxu0
    %v1782 = vadd.f32 %v330, %v1781
    %v1783 = vpop.f32.mrb[0].mxu0
    %v1784 = vpop.f32.mrb[0].mxu0
    %v1785 = vpop.f32.mrb[0].mxu0
    %1786 = vdwg.mxu0
    %v1787 = vsel %vm1179, %v1290, 0.0
    %v1788 = vsel %vm1179, %v1292, 0.0
    %v1789 = vadd.f32 %v1787, %v1788
    %v1790 = vsel %vm1179, %v1331, 0.0
    %v1791 = vadd.f32 %v1789, %v1790
    %v1792 = vsel %vm1179, %v1333, 0.0
    %v1793 = vadd.f32 %v1791, %v1792
    %v1794 = vsel %vm1179, %v1372, 0.0
    %v1795 = vadd.f32 %v1793, %v1794
    %v1796 = vsel %vm1179, %v1374, 0.0
    %v1797 = vadd.f32 %v1795, %v1796
    %v1798 = vsel %vm1179, %v1413, 0.0
    %v1799 = vadd.f32 %v1797, %v1798
    %v1800 = vsel %vm1179, %v1415, 0.0
    %v1801 = vadd.f32 %v1799, %v1800
    %v1802 = vsel %vm1179, %v1454, 0.0
    %v1803 = vadd.f32 %v1801, %v1802
    %v1804 = vsel %vm1179, %v1456, 0.0
    %v1805 = vadd.f32 %v1803, %v1804
    %v1806 = vsel %vm1179, %v1495, 0.0
    %v1807 = vadd.f32 %v1805, %v1806
    %v1808 = vsel %vm1179, %v1497, 0.0
    %v1809 = vadd.f32 %v1807, %v1808
    %v1810 = vsel %vm1179, %v1536, 0.0
    %v1811 = vadd.f32 %v1809, %v1810
    %v1812 = vsel %vm1179, %v1538, 0.0
    %v1813 = vadd.f32 %v1811, %v1812
    %v1814 = vsel %vm1179, %v1577, 0.0
    %v1815 = vadd.f32 %v1813, %v1814
    %v1816 = vsel %vm1179, %v1579, 0.0
    %v1817 = vadd.f32 %v1815, %v1816
    %v1818 = vsel %vm1179, %v1618, 0.0
    %v1819 = vadd.f32 %v1817, %v1818
    %v1820 = vsel %vm1179, %v1620, 0.0
    %v1821 = vadd.f32 %v1819, %v1820
    %v1822 = vsel %vm1179, %v1659, 0.0
    %v1823 = vadd.f32 %v1821, %v1822
    %v1824 = vsel %vm1179, %v1661, 0.0
    %v1825 = vadd.f32 %v1823, %v1824
    %v1826 = vsel %vm1179, %v1700, 0.0
    %v1827 = vadd.f32 %v1825, %v1826
    %v1828 = vsel %vm1179, %v1702, 0.0
    %v1829 = vadd.f32 %v1827, %v1828
    %v1830 = vsel %vm1179, %v1741, 0.0
    %v1831 = vadd.f32 %v1829, %v1830
    %v1832 = vsel %vm1179, %v1743, 0.0
    %v1833 = vadd.f32 %v1831, %v1832
    %vm1834 = vcmask 517120
    %v1835 = vsel %vm1834, %v1782, 0.0
    %v1836 = vadd.f32 %v1833, %v1835
    %1837 = vadd.xlane.f32.xlu0 %v1836
    %v1838 = vpop.xlane.xlu0 %1837
    %v1839 = vrot.slane %v1838, 4
    %v1840 = vadd.f32 %v1838, %v1839
    %v1841 = vrot.slane %v1840, 2
    %v1842 = vadd.f32 %v1840, %v1841
    %v1843 = vrot.slane %v1842, 1
    %v1844 = vadd.f32 %v1842, %v1843
    %s1845 = vtos %v1844
    %v1846 = vmul.f32 %v1290, %v1290
    %v1847 = vmul.f32 %v1292, %v1292
    %v1848 = vmul.f32 %v1331, %v1331
    %v1849 = vmul.f32 %v1333, %v1333
    %v1850 = vmul.f32 %v1372, %v1372
    %v1851 = vmul.f32 %v1374, %v1374
    %v1852 = vmul.f32 %v1413, %v1413
    %v1853 = vmul.f32 %v1415, %v1415
    %v1854 = vmul.f32 %v1454, %v1454
    %v1855 = vmul.f32 %v1456, %v1456
    %v1856 = vmul.f32 %v1495, %v1495
    %v1857 = vmul.f32 %v1497, %v1497
    %v1858 = vmul.f32 %v1536, %v1536
    %v1859 = vmul.f32 %v1538, %v1538
    %v1860 = vmul.f32 %v1577, %v1577
    %v1861 = vmul.f32 %v1579, %v1579
    %v1862 = vmul.f32 %v1618, %v1618
    %v1863 = vmul.f32 %v1620, %v1620
    %v1864 = vmul.f32 %v1659, %v1659
    %v1865 = vmul.f32 %v1661, %v1661
    %v1866 = vmul.f32 %v1700, %v1700
    %v1867 = vmul.f32 %v1702, %v1702
    %v1868 = vmul.f32 %v1741, %v1741
    %v1869 = vmul.f32 %v1743, %v1743
    %v1870 = vmul.f32 %v1782, %v1782
    %v1871 = vsel %vm1179, %v1846, 0.0
    %v1872 = vsel %vm1179, %v1847, 0.0
    %v1873 = vadd.f32 %v1871, %v1872
    %v1874 = vsel %vm1179, %v1848, 0.0
    %v1875 = vadd.f32 %v1873, %v1874
    %v1876 = vsel %vm1179, %v1849, 0.0
    %v1877 = vadd.f32 %v1875, %v1876
    %v1878 = vsel %vm1179, %v1850, 0.0
    %v1879 = vadd.f32 %v1877, %v1878
    %v1880 = vsel %vm1179, %v1851, 0.0
    %v1881 = vadd.f32 %v1879, %v1880
    %v1882 = vsel %vm1179, %v1852, 0.0
    %v1883 = vadd.f32 %v1881, %v1882
    %v1884 = vsel %vm1179, %v1853, 0.0
    %v1885 = vadd.f32 %v1883, %v1884
    %v1886 = vsel %vm1179, %v1854, 0.0
    %v1887 = vadd.f32 %v1885, %v1886
    %v1888 = vsel %vm1179, %v1855, 0.0
    %v1889 = vadd.f32 %v1887, %v1888
    %v1890 = vsel %vm1179, %v1856, 0.0
    %v1891 = vadd.f32 %v1889, %v1890
    %v1892 = vsel %vm1179, %v1857, 0.0
    %v1893 = vadd.f32 %v1891, %v1892
    %v1894 = vsel %vm1179, %v1858, 0.0
    %v1895 = vadd.f32 %v1893, %v1894
    %v1896 = vsel %vm1179, %v1859, 0.0
    %v1897 = vadd.f32 %v1895, %v1896
    %v1898 = vsel %vm1179, %v1860, 0.0
    %v1899 = vadd.f32 %v1897, %v1898
    %v1900 = vsel %vm1179, %v1861, 0.0
    %v1901 = vadd.f32 %v1899, %v1900
    %v1902 = vsel %vm1179, %v1862, 0.0
    %v1903 = vadd.f32 %v1901, %v1902
    %v1904 = vsel %vm1179, %v1863, 0.0
    %v1905 = vadd.f32 %v1903, %v1904
    %v1906 = vsel %vm1179, %v1864, 0.0
    %v1907 = vadd.f32 %v1905, %v1906
    %v1908 = vsel %vm1179, %v1865, 0.0
    %v1909 = vadd.f32 %v1907, %v1908
    %v1910 = vsel %vm1179, %v1866, 0.0
    %v1911 = vadd.f32 %v1909, %v1910
    %v1912 = vsel %vm1179, %v1867, 0.0
    %v1913 = vadd.f32 %v1911, %v1912
    %v1914 = vsel %vm1179, %v1868, 0.0
    %v1915 = vadd.f32 %v1913, %v1914
    %v1916 = vsel %vm1179, %v1869, 0.0
    %v1917 = vadd.f32 %v1915, %v1916
    %v1918 = vsel %vm1834, %v1870, 0.0
    %v1919 = vadd.f32 %v1917, %v1918
    %1920 = vadd.xlane.f32.xlu0 %v1919
    %v1921 = vpop.xlane.xlu0 %1920
    %v1922 = vrot.slane %v1921, 4
    %v1923 = vadd.f32 %v1921, %v1922
    %v1924 = vrot.slane %v1923, 2
    %v1925 = vadd.f32 %v1923, %v1924
    %v1926 = vrot.slane %v1925, 1
    %v1927 = vadd.f32 %v1925, %v1926
    %s1928 = vtos %v1927
    %v1929 = vrcp.pop 6272.0
    %s1930 = vtos %v1929
    %s1931 = smul.f32 %s1845, %s1930
    %v1932 = vrcp.pop 6272.0
    %s1933 = vtos %v1932
    %s1934 = smul.f32 %s1928, %s1933
    %s1935 = smul.f32 %s1931, %s1931
    %s1936 = ssub.f32 %s1934, %s1935
    %v1937 = vstv %s1931
    %v1938 = vsub.f32 %v1290, %v1937
    %v1939 = vsub.f32 %v1292, %v1937
    %v1940 = vsub.f32 %v1331, %v1937
    %v1941 = vsub.f32 %v1333, %v1937
    %v1942 = vsub.f32 %v1372, %v1937
    %v1943 = vsub.f32 %v1374, %v1937
    %v1944 = vsub.f32 %v1413, %v1937
    %v1945 = vsub.f32 %v1415, %v1937
    %v1946 = vsub.f32 %v1454, %v1937
    %v1947 = vsub.f32 %v1456, %v1937
    %v1948 = vsub.f32 %v1495, %v1937
    %v1949 = vsub.f32 %v1497, %v1937
    %v1950 = vsub.f32 %v1536, %v1937
    %v1951 = vsub.f32 %v1538, %v1937
    %v1952 = vsub.f32 %v1577, %v1937
    %v1953 = vsub.f32 %v1579, %v1937
    %v1954 = vsub.f32 %v1618, %v1937
    %v1955 = vsub.f32 %v1620, %v1937
    %v1956 = vsub.f32 %v1659, %v1937
    %v1957 = vsub.f32 %v1661, %v1937
    %v1958 = vsub.f32 %v1700, %v1937
    %v1959 = vsub.f32 %v1702, %v1937
    %v1960 = vsub.f32 %v1741, %v1937
    %v1961 = vsub.f32 %v1743, %v1937
    %v1962 = vsub.f32 %v1782, %v1937
    %s1963 = sadd.f32 %s1936, 1e-05
    %v1964 = vstv %s1963
    %v1965 = vrsqrt.pop %v1964
    %s1966 = vtos %v1965
    %v1967 = vstv %s1966
    %v1968 = vmul.f32 %v1938, %v1967
    %v1969 = vmul.f32 %v1939, %v1967
    %v1970 = vmul.f32 %v1940, %v1967
    %v1971 = vmul.f32 %v1941, %v1967
    %v1972 = vmul.f32 %v1942, %v1967
    %v1973 = vmul.f32 %v1943, %v1967
    %v1974 = vmul.f32 %v1944, %v1967
    %v1975 = vmul.f32 %v1945, %v1967
    %v1976 = vmul.f32 %v1946, %v1967
    %v1977 = vmul.f32 %v1947, %v1967
    %v1978 = vmul.f32 %v1948, %v1967
    %v1979 = vmul.f32 %v1949, %v1967
    %v1980 = vmul.f32 %v1950, %v1967
    %v1981 = vmul.f32 %v1951, %v1967
    %v1982 = vmul.f32 %v1952, %v1967
    %v1983 = vmul.f32 %v1953, %v1967
    %v1984 = vmul.f32 %v1954, %v1967
    %v1985 = vmul.f32 %v1955, %v1967
    %v1986 = vmul.f32 %v1956, %v1967
    %v1987 = vmul.f32 %v1957, %v1967
    %v1988 = vmul.f32 %v1958, %v1967
    %v1989 = vmul.f32 %v1959, %v1967
    %v1990 = vmul.f32 %v1960, %v1967
    %v1991 = vmul.f32 %v1961, %v1967
    %v1992 = vmul.f32 %v1962, %v1967
    %v1993 = vld [vmem:[#allocation2] sm:$0x1]
    %v1995 = vlaneseq
    %v1996 = vshrl.u32 %v1995, 7
    %v1997 = vsub.s32 0, %v1996
    %v1998 = vrot.slane %v1993, %v1997
    %1999 = vset.pattern.permute.xlu0 0
    %2000 = vperm.xlu0 %1999, %v1998
    %v2001 = vpop.permute.xlu0 %2000
    %v2003 = vmul.f32 %v1968, %v2001
    %v2004 = vmul.f32 %v1969, %v2001
    %v2005 = vmul.f32 %v1970, %v2001
    %v2006 = vmul.f32 %v1971, %v2001
    %v2007 = vmul.f32 %v1972, %v2001
    %v2008 = vmul.f32 %v1973, %v2001
    %v2009 = vmul.f32 %v1974, %v2001
    %v2010 = vmul.f32 %v1975, %v2001
    %v2011 = vmul.f32 %v1976, %v2001
    %v2012 = vmul.f32 %v1977, %v2001
    %v2013 = vmul.f32 %v1978, %v2001
    %v2014 = vmul.f32 %v1979, %v2001
    %v2015 = vmul.f32 %v1980, %v2001
    %v2016 = vmul.f32 %v1981, %v2001
    %v2017 = vmul.f32 %v1982, %v2001
    %v2018 = vmul.f32 %v1983, %v2001
    %v2019 = vmul.f32 %v1984, %v2001
    %v2020 = vmul.f32 %v1985, %v2001
    %v2021 = vmul.f32 %v1986, %v2001
    %v2022 = vmul.f32 %v1987, %v2001
    %v2023 = vmul.f32 %v1988, %v2001
    %v2024 = vmul.f32 %v1989, %v2001
    %v2025 = vmul.f32 %v1990, %v2001
    %v2026 = vmul.f32 %v1991, %v2001
    %v2027 = vmul.f32 %v1992, %v2001
    %v2028 = vld [vmem:[#allocation3] sm:$0x1]
    %v2030 = vlaneseq
    %v2031 = vshrl.u32 %v2030, 7
    %v2032 = vsub.s32 0, %v2031
    %v2033 = vrot.slane %v2028, %v2032
    %2034 = vset.pattern.permute.xlu0 0
    %2035 = vperm.xlu0 %2034, %v2033
    %v2036 = vpop.permute.xlu0 %2035
    %v2038 = vadd.f32 %v2003, %v2036
    %v2039 = vadd.f32 %v2004, %v2036
    %v2040 = vadd.f32 %v2005, %v2036
    %v2041 = vadd.f32 %v2006, %v2036
    %v2042 = vadd.f32 %v2007, %v2036
    %v2043 = vadd.f32 %v2008, %v2036
    %v2044 = vadd.f32 %v2009, %v2036
    %v2045 = vadd.f32 %v2010, %v2036
    %v2046 = vadd.f32 %v2011, %v2036
    %v2047 = vadd.f32 %v2012, %v2036
    %v2048 = vadd.f32 %v2013, %v2036
    %v2049 = vadd.f32 %v2014, %v2036
    %v2050 = vadd.f32 %v2015, %v2036
    %v2051 = vadd.f32 %v2016, %v2036
    %v2052 = vadd.f32 %v2017, %v2036
    %v2053 = vadd.f32 %v2018, %v2036
    %v2054 = vadd.f32 %v2019, %v2036
    %v2055 = vadd.f32 %v2020, %v2036
    %v2056 = vadd.f32 %v2021, %v2036
    %v2057 = vadd.f32 %v2022, %v2036
    %v2058 = vadd.f32 %v2023, %v2036
    %v2059 = vadd.f32 %v2024, %v2036
    %v2060 = vadd.f32 %v2025, %v2036
    %v2061 = vadd.f32 %v2026, %v2036
    %v2062 = vadd.f32 %v2027, %v2036
    %v2063 = vmax.f32 %v2038, 0.0
    %v2064 = vmax.f32 %v2039, 0.0
    %v2065 = vmax.f32 %v2040, 0.0
    %v2066 = vmax.f32 %v2041, 0.0
    %v2067 = vmax.f32 %v2042, 0.0
    %v2068 = vmax.f32 %v2043, 0.0
    %v2069 = vmax.f32 %v2044, 0.0
    %v2070 = vmax.f32 %v2045, 0.0
    %v2071 = vmax.f32 %v2046, 0.0
    %v2072 = vmax.f32 %v2047, 0.0
    %v2073 = vmax.f32 %v2048, 0.0
    %v2074 = vmax.f32 %v2049, 0.0
    %v2075 = vmax.f32 %v2050, 0.0
    %v2076 = vmax.f32 %v2051, 0.0
    %v2077 = vmax.f32 %v2052, 0.0
    %v2078 = vmax.f32 %v2053, 0.0
    %v2079 = vmax.f32 %v2054, 0.0
    %v2080 = vmax.f32 %v2055, 0.0
    %v2081 = vmax.f32 %v2056, 0.0
    %v2082 = vmax.f32 %v2057, 0.0
    %v2083 = vmax.f32 %v2058, 0.0
    %v2084 = vmax.f32 %v2059, 0.0
    %v2085 = vmax.f32 %v2060, 0.0
    %v2086 = vmax.f32 %v2061, 0.0
    %v2087 = vmax.f32 %v2062, 0.0
    %v2113 = vcombine.low %v2063, %v2064
    %v2114 = vcombine.low %v2065, %v2066
    %v2116 = vunpack.c.l.s4 1983009808
    %v2117 = vunpack.c.0.s8 %v2116
    %v2118 = vlaneseq
    %v2119 = vshrl.u32 %v2118, 7
    %v2120 = vsub.s32 %v2117, %v2119
    %v2121 = vrot.slane %v2113, %v2120
    %v2123 = vunpack.c.l.s4 1983009808
    %v2124 = vunpack.c.0.s8 %v2123
    %v2125 = vlaneseq
    %v2126 = vshrl.u32 %v2125, 7
    %v2127 = vsub.s32 %v2124, %v2126
    %v2128 = vrot.slane %v2114, %v2127
    %v2129 = vcombine.low %v2121, %v2128
    %v2130 = vcombine.low %v2067, %v2068
    %v2131 = vcombine.low %v2069, %v2070
    %v2133 = vunpack.c.l.s4 1983009808
    %v2134 = vunpack.c.0.s8 %v2133
    %v2135 = vlaneseq
    %v2136 = vshrl.u32 %v2135, 7
    %v2137 = vsub.s32 %v2134, %v2136
    %v2138 = vrot.slane %v2130, %v2137
    %v2140 = vunpack.c.l.s4 1983009808
    %v2141 = vunpack.c.0.s8 %v2140
    %v2142 = vlaneseq
    %v2143 = vshrl.u32 %v2142, 7
    %v2144 = vsub.s32 %v2141, %v2143
    %v2145 = vrot.slane %v2131, %v2144
    %v2146 = vcombine.low %v2138, %v2145
    %v2147 = vcombine.low %v2071, %v2072
    %v2148 = vcombine.low %v2073, %v2074
    %v2150 = vunpack.c.l.s4 1983009808
    %v2151 = vunpack.c.0.s8 %v2150
    %v2152 = vlaneseq
    %v2153 = vshrl.u32 %v2152, 7
    %v2154 = vsub.s32 %v2151, %v2153
    %v2155 = vrot.slane %v2147, %v2154
    %v2157 = vunpack.c.l.s4 1983009808
    %v2158 = vunpack.c.0.s8 %v2157
    %v2159 = vlaneseq
    %v2160 = vshrl.u32 %v2159, 7
    %v2161 = vsub.s32 %v2158, %v2160
    %v2162 = vrot.slane %v2148, %v2161
    %v2163 = vcombine.low %v2155, %v2162
    %v2164 = vcombine.low %v2075, %v2076
    %v2165 = vcombine.low %v2077, %v2078
    %v2167 = vunpack.c.l.s4 1983009808
    %v2168 = vunpack.c.0.s8 %v2167
    %v2169 = vlaneseq
    %v2170 = vshrl.u32 %v2169, 7
    %v2171 = vsub.s32 %v2168, %v2170
    %v2172 = vrot.slane %v2164, %v2171
    %v2174 = vunpack.c.l.s4 1983009808
    %v2175 = vunpack.c.0.s8 %v2174
    %v2176 = vlaneseq
    %v2177 = vshrl.u32 %v2176, 7
    %v2178 = vsub.s32 %v2175, %v2177
    %v2179 = vrot.slane %v2165, %v2178
    %v2180 = vcombine.low %v2172, %v2179
    %v2181 = vcombine.low %v2079, %v2080
    %v2182 = vcombine.low %v2081, %v2082
    %v2184 = vunpack.c.l.s4 1983009808
    %v2185 = vunpack.c.0.s8 %v2184
    %v2186 = vlaneseq
    %v2187 = vshrl.u32 %v2186, 7
    %v2188 = vsub.s32 %v2185, %v2187
    %v2189 = vrot.slane %v2181, %v2188
    %v2191 = vunpack.c.l.s4 1983009808
    %v2192 = vunpack.c.0.s8 %v2191
    %v2193 = vlaneseq
    %v2194 = vshrl.u32 %v2193, 7
    %v2195 = vsub.s32 %v2192, %v2194
    %v2196 = vrot.slane %v2182, %v2195
    %v2197 = vcombine.low %v2189, %v2196
    %v2198 = vcombine.low %v2083, %v2084
    %v2199 = vcombine.low %v2085, %v2086
    %v2201 = vunpack.c.l.s4 1983009808
    %v2202 = vunpack.c.0.s8 %v2201
    %v2203 = vlaneseq
    %v2204 = vshrl.u32 %v2203, 7
    %v2205 = vsub.s32 %v2202, %v2204
    %v2206 = vrot.slane %v2198, %v2205
    %v2208 = vunpack.c.l.s4 1983009808
    %v2209 = vunpack.c.0.s8 %v2208
    %v2210 = vlaneseq
    %v2211 = vshrl.u32 %v2210, 7
    %v2212 = vsub.s32 %v2209, %v2211
    %v2213 = vrot.slane %v2199, %v2212
    %v2214 = vcombine.low %v2206, %v2213
    %v2216 = vunpack.c.l.s4 1983009808
    %v2217 = vunpack.c.0.s8 %v2216
    %v2218 = vlaneseq
    %v2219 = vshrl.u32 %v2218, 7
    %v2220 = vsub.s32 %v2217, %v2219
    %v2221 = vrot.slane %v2087, %v2220
    %2229 = vst [vmem:[#allocation9] sm:$0xff] %v2129
    %2230 = vst [vmem:[#allocation9 + $0x8] sm:$0xff] %v2146
    %2231 = vst [vmem:[#allocation9 + $0x10] sm:$0xff] %v2163
    %2232 = vst [vmem:[#allocation9 + $0x18] sm:$0xff] %v2180
    %2233 = vst [vmem:[#allocation9 + $0x20] sm:$0xff] %v2197
    %2234 = vst [vmem:[#allocation9 + $0x28] sm:$0xff] %v2214
    %2235 = vst.msk [vmem:[#allocation9 + $0x30] sm:$0x3] %vm1834, %v2221
    // Predicated region
    $region30: #{tpu_custom_call.1} parent=1 // pred_check
      _
    $region31: #{tpu_custom_call.1} parent=1 // pred_check_branch
      %2237 = sbr.rel (0) target = $region33
    $region32: #{tpu_custom_call.1} parent=1 // pred_region
      %s2239 = ssub.s32 800, 800
      %2240 = vsyncadd [#allocation6], %s2239
      %s2242 = sshll.u32 [#allocation9], 4
      %s2243 = int_to_ptr.vmem [resolvable:$true] %s2242
      %2245 = dma.vmem_to_hbm [thread:$0]  %s2243, 800, %s5, [#allocation6]
    $region33: #{tpu_custom_call.1} parent=1 // pred_fallthru
      _
    // Predicated region
    $region34: #{tpu_custom_call.1} parent=1 // pred_check
      _
    $region35: #{tpu_custom_call.1} parent=1 // pred_check_branch
      %2247 = sbr.rel (0) target = $region37
    $region36: #{tpu_custom_call.1} parent=1 // pred_region
      %2248 = dma.done [#allocation6], 800
    $region37: #{tpu_custom_call.1} parent=1 // pred_fallthru
      _
    %2249 = vsyncpa [#allocation5], 1
    %2250 = vsyncpa [#allocation8], 1
    %2251 = vsyncpa [#allocation6], 1

</llo_original>
